<compile_context>
chip_gen: v5e
topology: v5e:2x2
jax: 0.10.0
libtpu: 0.0.40
codegen_flags: <defaults>
</compile_context>

<pallas_src>
import functools

import jax
import jax.numpy as jnp
import numpy as np
from jax.experimental import pallas as pl
from jax.experimental.pallas import tpu as pltpu

HIGHEST = jax.lax.Precision.HIGHEST  # used only by the plain-JAX reference


def _dense_layer_kernel(x_ref, s1_ref, b1_ref, w1_ref, b2_ref, w2_ref,
                        cmask_ref, o_ref, *, H, W):
    """Processes one batch image per grid step (channels-last, spatial flat).

    x_ref:     (1, H*W, Cin)   input image, NHWC flattened to (HW, Cin)
    s1_ref:    (1, Cin)        folded BN1 scale
    b1_ref:    (1, Cin)        folded BN1 bias
    w1_ref:    (Cin, C1)       1x1 conv weight with BN2 scale folded in
    b2_ref:    (1, C1)         folded BN2 bias
    w2_ref:    (9*C1, Cout)    3x3 conv weight, taps (a, b) row-major
    cmask_ref: (2, H*W, C1)    column border masks: [0]: j>=1, [1]: j<=W-2
    o_ref:     (1, H*W, Cout)  new features y only (concat with x in wrapper)
    """
    HW = H * W
    C1 = w1_ref.shape[1]

    x2 = x_ref[0]                                              # (HW, Cin)

    # --- BN1 (folded) + ReLU ---
    h = jnp.maximum(x2 * s1_ref[...] + b1_ref[...], 0.0)

    # --- 1x1 conv (BN2 scale pre-folded into w1) + BN2 bias + ReLU ---
    t = jnp.dot(h, w1_ref[...], preferred_element_type=jnp.float32)
    t = jnp.maximum(t + b2_ref[...], 0.0)                      # (HW, C1)

    # --- dj = -1 / +1 column shifts: XLU roll (non-negative shifts only) +
    #     hoisted border masks that zero the wrap-around rows ---
    u_l = cmask_ref[0] * pltpu.roll(t, 1, axis=0)              # t[i, j-1, :]
    u_r = cmask_ref[1] * pltpu.roll(t, HW - 1, axis=0)         # t[i, j+1, :]
    u = (u_l, t, u_r)

    # --- di = -1 / +1 row shifts: sublane-aligned zero-fill concats ---
    zrow = jnp.zeros((W, C1), jnp.float32)

    def row_up(v):       # value of row i-1 at output row i (top row -> 0)
        return jnp.concatenate([zrow, v[:HW - W, :]], axis=0)

    def row_down(v):     # value of row i+1 at output row i (bottom row -> 0)
        return jnp.concatenate([v[W:, :], zrow], axis=0)

    taps = []
    for a in range(3):           # kernel row index -> source row i + a - 1
        for b in range(3):       # kernel col index -> source col j + b - 1
            v = u[b]
            if a == 0:
                v = row_up(v)
            elif a == 2:
                v = row_down(v)
            taps.append(v)
    cols = jnp.concatenate(taps, axis=-1)                      # (HW, 9*C1)

    # --- 3x3 conv as a single im2col matmul (K = 9*C1) ---
    y = jnp.dot(cols, w2_ref[...], preferred_element_type=jnp.float32)

    # Dropout is identity in eval mode; store y only.
    o_ref[0] = y.astype(o_ref.dtype)


def dense_layer_pallas_nhwc(x_nhwc, params):
    """NHWC entry point: (N, H, W, Cin) -> (N, H, W, Cin + growth)."""
    s1, b1, w1_eff, b2, w2 = params
    N, H, W, Cin = x_nhwc.shape
    C1 = w1_eff.shape[1]
    Cout = w2.shape[1]
    HW = H * W

    x_flat = x_nhwc.reshape(N, HW, Cin)

    # Column border masks, hoisted out of the kernel (constant per shape).
    col = jnp.tile(jnp.arange(W, dtype=jnp.int32), H)[:, None]        # (HW, 1)
    ones = jnp.ones((HW, C1), jnp.float32)
    cmask = jnp.stack([jnp.where(col >= 1, ones, 0.0),
                       jnp.where(col <= W - 2, ones, 0.0)])           # (2,HW,C1)

    kernel = functools.partial(_dense_layer_kernel, H=H, W=W)

    y_flat = pl.pallas_call(
        kernel,
        out_shape=jax.ShapeDtypeStruct((N, HW, Cout), jnp.float32),
        grid_spec=pltpu.PrefetchScalarGridSpec(
            num_scalar_prefetch=0,
            grid=(N,),
            in_specs=[
                pl.BlockSpec((1, HW, Cin), lambda n: (n, 0, 0)),
                pl.BlockSpec((1, Cin), lambda n: (0, 0)),
                pl.BlockSpec((1, Cin), lambda n: (0, 0)),
                pl.BlockSpec((Cin, C1), lambda n: (0, 0)),
                pl.BlockSpec((1, C1), lambda n: (0, 0)),
                pl.BlockSpec((9 * C1, Cout), lambda n: (0, 0)),
                pl.BlockSpec((2, HW, C1), lambda n: (0, 0, 0)),
            ],
            out_specs=pl.BlockSpec((1, HW, Cout), lambda n: (n, 0, 0)),
        ),
        compiler_params=pltpu.CompilerParams(
            dimension_semantics=("parallel",)),
    )(x_flat, s1, b1, w1_eff, b2, w2, cmask)

    y_nhwc = y_flat.reshape(N, H, W, Cout)
    # torch.cat([x, y], dim=1) == channel-axis concat in NHWC.
    return jnp.concatenate([x_nhwc, y_nhwc], axis=-1)


def dense_layer_pallas(x_nchw, params):
    """PyTorch-layout entry point: (N, Cin, H, W) -> (N, Cin+growth, H, W)."""
    # Single layout transpose at the module boundary; chain layers through
    # dense_layer_pallas_nhwc to keep the whole dense block channels-last.
    x_nhwc = jnp.transpose(x_nchw, (0, 2, 3, 1))
    out_nhwc = dense_layer_pallas_nhwc(x_nhwc, params)
    return jnp.transpose(out_nhwc, (0, 3, 1, 2))


def make_params(key, in_channels, growth_rate, bn_size=4):
    """Deterministic synthetic params; BNs folded for eval mode."""
    c1 = bn_size * growth_rate
    ks = jax.random.split(key, 10)
    eps = 1e-5

    # BN1 (over in_channels)
    g1 = 1.0 + 0.1 * jax.random.normal(ks[0], (in_channels,), jnp.float32)
    be1 = 0.1 * jax.random.normal(ks[1], (in_channels,), jnp.float32)
    rm1 = 0.1 * jax.random.normal(ks[2], (in_channels,), jnp.float32)
    rv1 = jnp.abs(jax.random.normal(ks[3], (in_channels,), jnp.float32)) + 0.5
    s1 = g1 / jnp.sqrt(rv1 + eps)
    b1 = be1 - rm1 * s1

    # Conv 1x1: PyTorch (c1, in_channels, 1, 1) -> (in_channels, c1)
    w1 = 0.1 * jax.random.normal(ks[4], (in_channels, c1), jnp.float32)

    # BN2 (over c1)
    g2 = 1.0 + 0.1 * jax.random.normal(ks[5], (c1,), jnp.float32)
    be2 = 0.1 * jax.random.normal(ks[6], (c1,), jnp.float32)
    rm2 = 0.1 * jax.random.normal(ks[7], (c1,), jnp.float32)
    rv2 = jnp.abs(jax.random.normal(ks[8], (c1,), jnp.float32)) + 0.5
    s2 = g2 / jnp.sqrt(rv2 + eps)
    b2 = be2 - rm2 * s2

    # Fold BN2 scale into the 1x1 conv weight; bias stays in-kernel.
    w1_eff = w1 * s2[None, :]

    # Conv 3x3: PyTorch (growth, c1, 3, 3) -> (3, 3, c1, growth) -> (9*c1, growth)
    w2 = 0.1 * jax.random.normal(ks[9], (3, 3, c1, growth_rate), jnp.float32)
    w2 = w2.reshape(9 * c1, growth_rate)

    return (s1.reshape(1, -1), b1.reshape(1, -1), w1_eff,
            b2.reshape(1, -1), w2)


def dense_layer_ref(x_nchw, params):
    """Plain-JAX f32 (HIGHEST) reference with identical eval-mode math."""
    s1, b1, w1_eff, b2, w2 = params
    N, Cin, H, W = x_nchw.shape
    C1 = w1_eff.shape[1]
    Cout = w2.shape[1]
    x = jnp.transpose(x_nchw, (0, 2, 3, 1))
    h = jnp.maximum(x * s1[0] + b1[0], 0.0)
    t = jnp.einsum('nhwc,cd->nhwd', h, w1_eff, precision=HIGHEST) + b2[0]
    t = jnp.maximum(t, 0.0)
    tp = jnp.pad(t, ((0, 0), (1, 1), (1, 1), (0, 0)))
    w2_taps = w2.reshape(3, 3, C1, Cout)
    y = 0.0
    for a in range(3):
        for b in range(3):
            y = y + jnp.einsum('nhwc,cd->nhwd',
                               tp[:, a:a + H, b:b + W, :],
                               w2_taps[a, b], precision=HIGHEST)
    out = jnp.concatenate([x, y], axis=-1)
    return jnp.transpose(out, (0, 3, 1, 2))


if __name__ == "__main__":
    key = jax.random.PRNGKey(0)
    k_x, k_p = jax.random.split(key)

    N, in_channels, H, W = 2, 4, 16, 16
    growth_rate, bn_size = 8, 4

    x = jax.random.normal(k_x, (N, in_channels, H, W), jnp.float32)
    params = make_params(k_p, in_channels, growth_rate, bn_size)

    out = dense_layer_pallas(x, params)
    out = jax.block_until_ready(out)

    ref = dense_layer_ref(x, params)
    assert out.shape == (N, in_channels + growth_rate, H, W), out.shape
    # Default (bf16) MXU precision in the kernel vs f32 reference.
    np.testing.assert_allclose(np.asarray(out), np.asarray(ref),
                               rtol=2e-2, atol=2e-2)

    print("KERNEL_OK")
</pallas_src>

<mosaic_0001>
module attributes {stable_mosaic.version = 11 : i64} {
  func.func @_dense_layer_kernel(%arg0: i32, %arg1: memref<1x256x4xf32, #tpu.memory_space<vmem>>, %arg2: memref<1x4xf32, #tpu.memory_space<vmem>>, %arg3: memref<1x4xf32, #tpu.memory_space<vmem>>, %arg4: memref<4x32xf32, #tpu.memory_space<vmem>>, %arg5: memref<1x32xf32, #tpu.memory_space<vmem>>, %arg6: memref<288x8xf32, #tpu.memory_space<vmem>>, %arg7: memref<2x256x32xf32, #tpu.memory_space<vmem>>, %arg8: memref<1x256x8xf32, #tpu.memory_space<vmem>>) attributes {dimension_semantics = [#tpu.dimension_semantics<parallel>], iteration_bounds = array<i64: 2>, scalar_prefetch = 0 : i64, scratch_operands = 0 : i64, tpu.core_type = #tpu.core_type<tc>, window_params = [{transform_indices = @transform_0, window_bounds = array<i64: 1, 256, 4>}, {pipeline_mode = #tpu.pipeline_mode<synchronous>, transform_indices = @transform_1, window_bounds = array<i64: 1, 4>}, {pipeline_mode = #tpu.pipeline_mode<synchronous>, transform_indices = @transform_2, window_bounds = array<i64: 1, 4>}, {pipeline_mode = #tpu.pipeline_mode<synchronous>, transform_indices = @transform_3, window_bounds = array<i64: 4, 32>}, {pipeline_mode = #tpu.pipeline_mode<synchronous>, transform_indices = @transform_4, window_bounds = array<i64: 1, 32>}, {pipeline_mode = #tpu.pipeline_mode<synchronous>, transform_indices = @transform_5, window_bounds = array<i64: 288, 8>}, {pipeline_mode = #tpu.pipeline_mode<synchronous>, transform_indices = @transform_6, window_bounds = array<i64: 2, 256, 32>}, {transform_indices = @transform_7, window_bounds = array<i64: 1, 256, 8>}]} {
    %c0 = arith.constant 0 : index
    %c0_0 = arith.constant 0 : index
    %c0_1 = arith.constant 0 : index
    %0 = vector.load %arg1[%c0, %c0_0, %c0_1] : memref<1x256x4xf32, #tpu.memory_space<vmem>>, vector<1x256x4xf32>
    %1 = vector.shape_cast %0 : vector<1x256x4xf32> to vector<256x4xf32>
    %c0_2 = arith.constant 0 : index
    %c0_3 = arith.constant 0 : index
    %2 = vector.load %arg2[%c0_2, %c0_3] : memref<1x4xf32, #tpu.memory_space<vmem>>, vector<1x4xf32>
    %3 = vector.broadcast %2 : vector<1x4xf32> to vector<256x4xf32>
    %4 = arith.mulf %1, %3 : vector<256x4xf32>
    %c0_4 = arith.constant 0 : index
    %c0_5 = arith.constant 0 : index
    %5 = vector.load %arg3[%c0_4, %c0_5] : memref<1x4xf32, #tpu.memory_space<vmem>>, vector<1x4xf32>
    %6 = vector.broadcast %5 : vector<1x4xf32> to vector<256x4xf32>
    %7 = arith.addf %4, %6 : vector<256x4xf32>
    %cst = arith.constant 0.000000e+00 : f32
    %8 = vector.broadcast %cst : f32 to vector<256x4xf32>
    %9 = arith.maximumf %7, %8 : vector<256x4xf32>
    %c0_6 = arith.constant 0 : index
    %c0_7 = arith.constant 0 : index
    %10 = vector.load %arg4[%c0_6, %c0_7] : memref<4x32xf32, #tpu.memory_space<vmem>>, vector<4x32xf32>
    %cst_8 = arith.constant dense<0.000000e+00> : vector<256x32xf32>
    %11 = tpu.matmul %9, %10, %cst_8 {dimension_numbers = #tpu.dot_dimension_numbers<[1], [0], [0], [1], [0, 0, 1, 1], [], []>} : vector<256x4xf32>, vector<4x32xf32>, vector<256x32xf32> -> vector<256x32xf32>
    %c0_9 = arith.constant 0 : index
    %c0_10 = arith.constant 0 : index
    %12 = vector.load %arg5[%c0_9, %c0_10] : memref<1x32xf32, #tpu.memory_space<vmem>>, vector<1x32xf32>
    %13 = vector.broadcast %12 : vector<1x32xf32> to vector<256x32xf32>
    %14 = arith.addf %11, %13 : vector<256x32xf32>
    %cst_11 = arith.constant 0.000000e+00 : f32
    %15 = vector.broadcast %cst_11 : f32 to vector<256x32xf32>
    %16 = arith.maximumf %14, %15 : vector<256x32xf32>
    %c0_12 = arith.constant 0 : index
    %c0_13 = arith.constant 0 : index
    %c0_14 = arith.constant 0 : index
    %17 = vector.load %arg7[%c0_12, %c0_13, %c0_14] : memref<2x256x32xf32, #tpu.memory_space<vmem>>, vector<1x256x32xf32>
    %18 = vector.shape_cast %17 : vector<1x256x32xf32> to vector<256x32xf32>
    %c1_i32 = arith.constant 1 : i32
    %19 = tpu.dynamic_rotate %16 by %c1_i32 dim 0 : vector<256x32xf32>, i32 -> vector<256x32xf32>
    %20 = arith.mulf %18, %19 : vector<256x32xf32>
    %c1 = arith.constant 1 : index
    %c0_15 = arith.constant 0 : index
    %c0_16 = arith.constant 0 : index
    %21 = vector.load %arg7[%c1, %c0_15, %c0_16] : memref<2x256x32xf32, #tpu.memory_space<vmem>>, vector<1x256x32xf32>
    %22 = vector.shape_cast %21 : vector<1x256x32xf32> to vector<256x32xf32>
    %c255_i32 = arith.constant 255 : i32
    %23 = tpu.dynamic_rotate %16 by %c255_i32 dim 0 : vector<256x32xf32>, i32 -> vector<256x32xf32>
    %24 = arith.mulf %22, %23 : vector<256x32xf32>
    %cst_17 = arith.constant 0.000000e+00 : f32
    %25 = vector.broadcast %cst_17 : f32 to vector<16x32xf32>
    %26 = vector.extract_strided_slice %20 {offsets = [0, 0], sizes = [240, 32], strides = [1, 1]} : vector<256x32xf32> to vector<240x32xf32>
    %27 = tpu.concatenate %25, %26 in 0 : vector<16x32xf32>, vector<240x32xf32> -> vector<256x32xf32>
    %28 = vector.extract_strided_slice %16 {offsets = [0, 0], sizes = [240, 32], strides = [1, 1]} : vector<256x32xf32> to vector<240x32xf32>
    %29 = tpu.concatenate %25, %28 in 0 : vector<16x32xf32>, vector<240x32xf32> -> vector<256x32xf32>
    %30 = vector.extract_strided_slice %24 {offsets = [0, 0], sizes = [240, 32], strides = [1, 1]} : vector<256x32xf32> to vector<240x32xf32>
    %31 = tpu.concatenate %25, %30 in 0 : vector<16x32xf32>, vector<240x32xf32> -> vector<256x32xf32>
    %32 = vector.extract_strided_slice %20 {offsets = [16, 0], sizes = [240, 32], strides = [1, 1]} : vector<256x32xf32> to vector<240x32xf32>
    %33 = tpu.concatenate %32, %25 in 0 : vector<240x32xf32>, vector<16x32xf32> -> vector<256x32xf32>
    %34 = vector.extract_strided_slice %16 {offsets = [16, 0], sizes = [240, 32], strides = [1, 1]} : vector<256x32xf32> to vector<240x32xf32>
    %35 = tpu.concatenate %34, %25 in 0 : vector<240x32xf32>, vector<16x32xf32> -> vector<256x32xf32>
    %36 = vector.extract_strided_slice %24 {offsets = [16, 0], sizes = [240, 32], strides = [1, 1]} : vector<256x32xf32> to vector<240x32xf32>
    %37 = tpu.concatenate %36, %25 in 0 : vector<240x32xf32>, vector<16x32xf32> -> vector<256x32xf32>
    %38 = tpu.concatenate %27, %29, %31, %20, %16, %24, %33, %35, %37 in 1 : vector<256x32xf32>, vector<256x32xf32>, vector<256x32xf32>, vector<256x32xf32>, vector<256x32xf32>, vector<256x32xf32>, vector<256x32xf32>, vector<256x32xf32>, vector<256x32xf32> -> vector<256x288xf32>
    %c0_18 = arith.constant 0 : index
    %c0_19 = arith.constant 0 : index
    %39 = vector.load %arg6[%c0_18, %c0_19] : memref<288x8xf32, #tpu.memory_space<vmem>>, vector<288x8xf32>
    %cst_20 = arith.constant dense<0.000000e+00> : vector<256x8xf32>
    %40 = tpu.matmul %38, %39, %cst_20 {dimension_numbers = #tpu.dot_dimension_numbers<[1], [0], [0], [1], [0, 0, 1, 1], [], []>} : vector<256x288xf32>, vector<288x8xf32>, vector<256x8xf32> -> vector<256x8xf32>
    %c0_21 = arith.constant 0 : index
    %c0_22 = arith.constant 0 : index
    %c0_23 = arith.constant 0 : index
    %41 = vector.load %arg8[%c0_21, %c0_22, %c0_23] : memref<1x256x8xf32, #tpu.memory_space<vmem>>, vector<1x256x8xf32>
    %42 = vector.shape_cast %41 : vector<1x256x8xf32> to vector<256x8xf32>
    %43 = vector.shape_cast %40 : vector<256x8xf32> to vector<1x256x8xf32>
    tpu.vector_store %arg8[%c0_21, %c0_22, %c0_23], %43 {strides = array<i32>} : memref<1x256x8xf32, #tpu.memory_space<vmem>>, vector<1x256x8xf32>,
    return
  }
  func.func @transform_0(%arg0: i32) -> (i32, i32, i32) {
    %c0_i32 = arith.constant 0 : i32
    %c0_i32_0 = arith.constant 0 : i32
    %c0_i32_1 = arith.constant 0 : i32
    return %arg0, %c0_i32, %c0_i32_0 : i32, i32, i32
  }
  func.func @transform_1(%arg0: i32) -> (i32, i32) {
    %c0_i32 = arith.constant 0 : i32
    %c0_i32_0 = arith.constant 0 : i32
    %c0_i32_1 = arith.constant 0 : i32
    return %c0_i32, %c0_i32_0 : i32, i32
  }
  func.func @transform_2(%arg0: i32) -> (i32, i32) {
    %c0_i32 = arith.constant 0 : i32
    %c0_i32_0 = arith.constant 0 : i32
    %c0_i32_1 = arith.constant 0 : i32
    return %c0_i32, %c0_i32_0 : i32, i32
  }
  func.func @transform_3(%arg0: i32) -> (i32, i32) {
    %c0_i32 = arith.constant 0 : i32
    %c0_i32_0 = arith.constant 0 : i32
    %c0_i32_1 = arith.constant 0 : i32
    return %c0_i32, %c0_i32_0 : i32, i32
  }
  func.func @transform_4(%arg0: i32) -> (i32, i32) {
    %c0_i32 = arith.constant 0 : i32
    %c0_i32_0 = arith.constant 0 : i32
    %c0_i32_1 = arith.constant 0 : i32
    return %c0_i32, %c0_i32_0 : i32, i32
  }
  func.func @transform_5(%arg0: i32) -> (i32, i32) {
    %c0_i32 = arith.constant 0 : i32
    %c0_i32_0 = arith.constant 0 : i32
    %c0_i32_1 = arith.constant 0 : i32
    return %c0_i32, %c0_i32_0 : i32, i32
  }
  func.func @transform_6(%arg0: i32) -> (i32, i32, i32) {
    %c0_i32 = arith.constant 0 : i32
    %c0_i32_0 = arith.constant 0 : i32
    %c0_i32_1 = arith.constant 0 : i32
    %c0_i32_2 = arith.constant 0 : i32
    return %c0_i32, %c0_i32_0, %c0_i32_1 : i32, i32, i32
  }
  func.func @transform_7(%arg0: i32) -> (i32, i32, i32) {
    %c0_i32 = arith.constant 0 : i32
    %c0_i32_0 = arith.constant 0 : i32
    %c0_i32_1 = arith.constant 0 : i32
    return %arg0, %c0_i32, %c0_i32_0 : i32, i32, i32
  }
}

</mosaic_0001>

<llo_original>
// kernel: tpu_custom_call.1
$region0: #{tpu_custom_call.1}
  #allocation0 [shape = 'u32[]', space=smem, size = 0x4, offset = 0x4, fixed_abs, tag = 'smem constant byte address 0x4 - core index']
  #allocation1 [shape = 'u32[72,128]{1,0:T(1,128)}', space=vmem, size = 0x9000, scoped, tag = 'internal scratch']
  %s0 = inlined_call_operand.vmem [shape: f32[2,256,4], index: 0, kind: input, shape index: {}]
  %s1 = inlined_call_operand.vmem [shape: f32[1,4], index: 1, kind: input, shape index: {}]
  %s2 = inlined_call_operand.vmem [shape: f32[1,4], index: 2, kind: input, shape index: {}]
  %s3 = inlined_call_operand.vmem [shape: f32[4,32], index: 3, kind: input, shape index: {}]
  %s4 = inlined_call_operand.vmem [shape: f32[1,32], index: 4, kind: input, shape index: {}]
  %s5 = inlined_call_operand.vmem [shape: f32[288,8], index: 5, kind: input, shape index: {}]
  %s6 = inlined_call_operand.vmem [shape: f32[2,256,32], index: 6, kind: input, shape index: {}]
  %s7 = inlined_call_operand.vmem [shape: f32[2,256,8], index: 7, kind: output, shape index: {}]
  %s8 = sld [smem:[#allocation0]]
  $region61: #{tpu_custom_call.1} parent=0
    _
  %s10 = ssub.s32 1, %s8
  %s11 = scalar_select 0, %s10, %s8
  loop: start=0, step=1, limit=4
  $region2: #{tpu_custom_call.1} parent=0 // loop_pre_header
    _
  $region3: #{tpu_custom_call.1} parent=0 // loop_header
    %s13 = sphi 0, %s17
    %p14 = scmp.ge.s32.totalorder %s13, 4
    %s23 = sphi 0, %s25
    %s26 = sphi 0, %s23
    %s27 = sphi 0, %s26
    %s43 = sphi 0, %s27
    %s47 = sphi 0, %s47
    %s49 = sphi 0, %s47
    %s50 = sphi 0, %s49
    %s64 = sphi 0, %s50
    %s68 = sphi 0, %s68
    %s70 = sphi 0, %s68
    %s71 = sphi 0, %s70
    %s85 = sphi 0, %s71
    %s89 = sphi 0, %s89
    %s91 = sphi 0, %s89
    %s92 = sphi 0, %s91
    %s106 = sphi 0, %s92
    %s110 = sphi 0, %s110
    %s112 = sphi 0, %s110
    %s113 = sphi 0, %s112
    %s127 = sphi 0, %s113
    %s131 = sphi 0, %s131
    %s133 = sphi 0, %s131
    %s134 = sphi 0, %s133
    %s148 = sphi 0, %s134
    %s152 = sphi 0, %s152
    %s154 = sphi 0, %s152
    %s155 = sphi 0, %s154
    %s169 = sphi 0, %s155
    %s175 = sphi 0, %s177
    %s178 = sphi 0, %s175
    %s179 = sphi 0, %s178
    %s195 = sphi 0, %s179
  $region4: #{tpu_custom_call.1} parent=0 // loop_header_branch
    %16 = sbr.rel (%p14) target = $region8
  $region5: #{tpu_custom_call.1} parent=0 // loop_body
    %s18 = ssub.s32 %s13, 1
    %s19 = ssub.s32 %s13, 2
    %s20 = sadd.s32 %s13, 1
    %s21 = ssub.s32 %s13, %s20
    %p22 = scmp.eq.s32.totalorder %s21, 0
    %s24 = sadd.s32 %s23, 1
    %s25 = scalar_select %p22, %s23, %s24
    %p28 = pneg %p22
    %p29 = scmp.eq.s32.totalorder %s13, 1
    %p30 = por %p28, %p29
    %p31 = scmp.ne.s32.totalorder %s23, %s26
    %p32 = scmp.eq.s32.totalorder %s13, 0
    %p33 = por %p31, %p32
    %p34 = scmp.ne.s32.totalorder %s23, %s26
    %p35 = scmp.eq.s32.totalorder %s18, 1
    %p36 = por %p34, %p35
    %p37 = scmp.ne.s32.totalorder %s26, %s27
    %p38 = scmp.eq.s32.totalorder %s18, 0
    %p39 = por %p37, %p38
    %p40 = scmp.ne.s32.totalorder %s26, %s27
    %p41 = scmp.eq.s32.totalorder %s19, 1
    %p42 = por %p40, %p41
    %p44 = scmp.ne.s32.totalorder %s27, %s43
    %p45 = scmp.eq.s32.totalorder %s19, 0
    %p46 = por %p44, %p45
    %s48 = sadd.s32 %s47, 1
    %p51 = scmp.eq.s32.totalorder %s13, 1
    %p52 = scmp.ne.s32.totalorder %s47, %s49
    %p53 = scmp.eq.s32.totalorder %s13, 0
    %p54 = por %p52, %p53
    %p55 = scmp.ne.s32.totalorder %s47, %s49
    %p56 = scmp.eq.s32.totalorder %s18, 1
    %p57 = por %p55, %p56
    %p58 = scmp.ne.s32.totalorder %s49, %s50
    %p59 = scmp.eq.s32.totalorder %s18, 0
    %p60 = por %p58, %p59
    %p61 = scmp.ne.s32.totalorder %s49, %s50
    %p62 = scmp.eq.s32.totalorder %s19, 1
    %p63 = por %p61, %p62
    %p65 = scmp.ne.s32.totalorder %s50, %s64
    %p66 = scmp.eq.s32.totalorder %s19, 0
    %p67 = por %p65, %p66
    %s69 = sadd.s32 %s68, 1
    %p72 = scmp.eq.s32.totalorder %s13, 1
    %p73 = scmp.ne.s32.totalorder %s68, %s70
    %p74 = scmp.eq.s32.totalorder %s13, 0
    %p75 = por %p73, %p74
    %p76 = scmp.ne.s32.totalorder %s68, %s70
    %p77 = scmp.eq.s32.totalorder %s18, 1
    %p78 = por %p76, %p77
    %p79 = scmp.ne.s32.totalorder %s70, %s71
    %p80 = scmp.eq.s32.totalorder %s18, 0
    %p81 = por %p79, %p80
    %p82 = scmp.ne.s32.totalorder %s70, %s71
    %p83 = scmp.eq.s32.totalorder %s19, 1
    %p84 = por %p82, %p83
    %p86 = scmp.ne.s32.totalorder %s71, %s85
    %p87 = scmp.eq.s32.totalorder %s19, 0
    %p88 = por %p86, %p87
    %s90 = sadd.s32 %s89, 1
    %p93 = scmp.eq.s32.totalorder %s13, 1
    %p94 = scmp.ne.s32.totalorder %s89, %s91
    %p95 = scmp.eq.s32.totalorder %s13, 0
    %p96 = por %p94, %p95
    %p97 = scmp.ne.s32.totalorder %s89, %s91
    %p98 = scmp.eq.s32.totalorder %s18, 1
    %p99 = por %p97, %p98
    %p100 = scmp.ne.s32.totalorder %s91, %s92
    %p101 = scmp.eq.s32.totalorder %s18, 0
    %p102 = por %p100, %p101
    %p103 = scmp.ne.s32.totalorder %s91, %s92
    %p104 = scmp.eq.s32.totalorder %s19, 1
    %p105 = por %p103, %p104
    %p107 = scmp.ne.s32.totalorder %s92, %s106
    %p108 = scmp.eq.s32.totalorder %s19, 0
    %p109 = por %p107, %p108
    %s111 = sadd.s32 %s110, 1
    %p114 = scmp.eq.s32.totalorder %s13, 1
    %p115 = scmp.ne.s32.totalorder %s110, %s112
    %p116 = scmp.eq.s32.totalorder %s13, 0
    %p117 = por %p115, %p116
    %p118 = scmp.ne.s32.totalorder %s110, %s112
    %p119 = scmp.eq.s32.totalorder %s18, 1
    %p120 = por %p118, %p119
    %p121 = scmp.ne.s32.totalorder %s112, %s113
    %p122 = scmp.eq.s32.totalorder %s18, 0
    %p123 = por %p121, %p122
    %p124 = scmp.ne.s32.totalorder %s112, %s113
    %p125 = scmp.eq.s32.totalorder %s19, 1
    %p126 = por %p124, %p125
    %p128 = scmp.ne.s32.totalorder %s113, %s127
    %p129 = scmp.eq.s32.totalorder %s19, 0
    %p130 = por %p128, %p129
    %s132 = sadd.s32 %s131, 1
    %p135 = scmp.eq.s32.totalorder %s13, 1
    %p136 = scmp.ne.s32.totalorder %s131, %s133
    %p137 = scmp.eq.s32.totalorder %s13, 0
    %p138 = por %p136, %p137
    %p139 = scmp.ne.s32.totalorder %s131, %s133
    %p140 = scmp.eq.s32.totalorder %s18, 1
    %p141 = por %p139, %p140
    %p142 = scmp.ne.s32.totalorder %s133, %s134
    %p143 = scmp.eq.s32.totalorder %s18, 0
    %p144 = por %p142, %p143
    %p145 = scmp.ne.s32.totalorder %s133, %s134
    %p146 = scmp.eq.s32.totalorder %s19, 1
    %p147 = por %p145, %p146
    %p149 = scmp.ne.s32.totalorder %s134, %s148
    %p150 = scmp.eq.s32.totalorder %s19, 0
    %p151 = por %p149, %p150
    %s153 = sadd.s32 %s152, 1
    %p156 = scmp.eq.s32.totalorder %s13, 1
    %p157 = scmp.ne.s32.totalorder %s152, %s154
    %p158 = scmp.eq.s32.totalorder %s13, 0
    %p159 = por %p157, %p158
    %p160 = scmp.ne.s32.totalorder %s152, %s154
    %p161 = scmp.eq.s32.totalorder %s18, 1
    %p162 = por %p160, %p161
    %p163 = scmp.ne.s32.totalorder %s154, %s155
    %p164 = scmp.eq.s32.totalorder %s18, 0
    %p165 = por %p163, %p164
    %p166 = scmp.ne.s32.totalorder %s154, %s155
    %p167 = scmp.eq.s32.totalorder %s19, 1
    %p168 = por %p166, %p167
    %p170 = scmp.ne.s32.totalorder %s155, %s169
    %p171 = scmp.eq.s32.totalorder %s19, 0
    %p172 = por %p170, %p171
    %s173 = ssub.s32 %s13, %s20
    %p174 = scmp.eq.s32.totalorder %s173, 0
    %s176 = sadd.s32 %s175, 1
    %s177 = scalar_select %p174, %s175, %s176
    %p180 = pneg %p174
    %p181 = scmp.eq.s32.totalorder %s13, 1
    %p182 = por %p180, %p181
    %p183 = scmp.ne.s32.totalorder %s175, %s178
    %p184 = scmp.eq.s32.totalorder %s13, 0
    %p185 = por %p183, %p184
    %p186 = scmp.ne.s32.totalorder %s175, %s178
    %p187 = scmp.eq.s32.totalorder %s18, 1
    %p188 = por %p186, %p187
    %p189 = scmp.ne.s32.totalorder %s178, %s179
    %p190 = scmp.eq.s32.totalorder %s18, 0
    %p191 = por %p189, %p190
    %p192 = scmp.ne.s32.totalorder %s178, %s179
    %p193 = scmp.eq.s32.totalorder %s19, 1
    %p194 = por %p192, %p193
    %p196 = scmp.ne.s32.totalorder %s179, %s195
    %p197 = scmp.eq.s32.totalorder %s19, 0
    %p198 = por %p196, %p197
    %p199 = scmp.le.s32.totalorder 1, %s13
    %p200 = scmp.lt.s32.totalorder %s13, 3
    %p201 = pnand %p199, %p200
    %p202 = pneg %p201
    // Predicated region
    $region9: #{tpu_custom_call.1} parent=5 // pred_check
      _
    $region10: #{tpu_custom_call.1} parent=5 // pred_check_branch
      %204 = sbr.rel (%p201) target = $region12
    $region11: #{tpu_custom_call.1} parent=5 // pred_region
      %s205 = ssub.s32 %s13, 1
      // Predicated region
      $region13: #{tpu_custom_call.1} parent=11 // pred_check
        %p206 = pneg %p60
      $region14: #{tpu_custom_call.1} parent=11 // pred_check_branch
        %208 = sbr.rel (%p206) target = $region16
      $region15: #{tpu_custom_call.1} parent=11 // pred_region
        _
      $region16: #{tpu_custom_call.1} parent=11 // pred_fallthru
        _
      // Predicated region
      $region17: #{tpu_custom_call.1} parent=11 // pred_check
        %p209 = pneg %p81
      $region18: #{tpu_custom_call.1} parent=11 // pred_check_branch
        %211 = sbr.rel (%p209) target = $region20
      $region19: #{tpu_custom_call.1} parent=11 // pred_region
        _
      $region20: #{tpu_custom_call.1} parent=11 // pred_fallthru
        _
      // Predicated region
      $region21: #{tpu_custom_call.1} parent=11 // pred_check
        %p212 = pneg %p102
      $region22: #{tpu_custom_call.1} parent=11 // pred_check_branch
        %214 = sbr.rel (%p212) target = $region24
      $region23: #{tpu_custom_call.1} parent=11 // pred_region
        _
      $region24: #{tpu_custom_call.1} parent=11 // pred_fallthru
        _
      // Predicated region
      $region25: #{tpu_custom_call.1} parent=11 // pred_check
        %p215 = pneg %p123
      $region26: #{tpu_custom_call.1} parent=11 // pred_check_branch
        %217 = sbr.rel (%p215) target = $region28
      $region27: #{tpu_custom_call.1} parent=11 // pred_region
        _
      $region28: #{tpu_custom_call.1} parent=11 // pred_fallthru
        _
      // Predicated region
      $region29: #{tpu_custom_call.1} parent=11 // pred_check
        %p218 = pneg %p144
      $region30: #{tpu_custom_call.1} parent=11 // pred_check_branch
        %220 = sbr.rel (%p218) target = $region32
      $region31: #{tpu_custom_call.1} parent=11 // pred_region
        _
      $region32: #{tpu_custom_call.1} parent=11 // pred_fallthru
        _
      // Predicated region
      $region33: #{tpu_custom_call.1} parent=11 // pred_check
        %p221 = pneg %p165
      $region34: #{tpu_custom_call.1} parent=11 // pred_check_branch
        %223 = sbr.rel (%p221) target = $region36
      $region35: #{tpu_custom_call.1} parent=11 // pred_region
        _
      $region36: #{tpu_custom_call.1} parent=11 // pred_fallthru
        _
    $region12: #{tpu_custom_call.1} parent=5 // pred_fallthru
      _
    %p224 = scmp.lt.s32.totalorder %s13, 2
    // Predicated region
    $region37: #{tpu_custom_call.1} parent=5 // pred_check
      %p225 = pneg %p224
    $region38: #{tpu_custom_call.1} parent=5 // pred_check_branch
      %227 = sbr.rel (%p225) target = $region40
    $region39: #{tpu_custom_call.1} parent=5 // pred_region
      // Predicated region
      $region41: #{tpu_custom_call.1} parent=39 // pred_check
        %p228 = pneg %p33
      $region42: #{tpu_custom_call.1} parent=39 // pred_check_branch
        %230 = sbr.rel (%p228) target = $region44
      $region43: #{tpu_custom_call.1} parent=39 // pred_region
        %p231 = scmp.lt.s32.totalorder %s13, 1
        %s232 = scalar_select %p231, %s13, 1
        %s233 = smul.addr %s232, 32
        %s234 = smul.addr %s233, 8
        %s235 = scalar_lea.vmem %s0, %s234
      $region44: #{tpu_custom_call.1} parent=39 // pred_fallthru
        _
    $region40: #{tpu_custom_call.1} parent=5 // pred_fallthru
      _
    %p236 = scmp.le.s32.totalorder 1, %s13
    %p237 = scmp.lt.s32.totalorder %s13, 3
    %p238 = pnand %p236, %p237
    %p239 = pneg %p238
    // Predicated region
    $region45: #{tpu_custom_call.1} parent=5 // pred_check
      _
    $region46: #{tpu_custom_call.1} parent=5 // pred_check_branch
      %241 = sbr.rel (%p238) target = $region48
    $region47: #{tpu_custom_call.1} parent=5 // pred_region
      %s242 = ssub.s32 %s13, 1
      %p243 = scmp.lt.s32.totalorder %s18, 1
      %s244 = scalar_select %p243, %s18, 1
      %s245 = smul.addr %s244, 32
      %s246 = smul.addr %s245, 8
      %s247 = scalar_lea.vmem %s0, %s246
      %p248 = pneg %p39
      %p249 = pneg %p36
      %p250 = pneg %p60
      %p251 = pneg %p57
      %p252 = pneg %p81
      %p253 = pneg %p78
      %p254 = pneg %p102
      %p255 = pneg %p99
      %p256 = pneg %p123
      %p257 = pneg %p120
      %p258 = pneg %p144
      %p259 = pneg %p141
      %p260 = pneg %p165
      %p261 = pneg %p162
      %p262 = pneg %p191
      %p263 = pneg %p188
      %p264 = scmp.lt.s32.totalorder %s18, 1
      %s265 = scalar_select %p264, %s18, 1
      %s266 = smul.addr %s265, 32
      %s267 = smul.addr %s266, 8
      %s268 = scalar_lea.vmem %s7, %s267
      %p269 = scmp.lt.s32.totalorder %s18, 1
      %s270 = scalar_select %p269, %s18, 1
      %s271 = smul.addr %s270, 32
      %s272 = smul.addr %s271, 8
      %s273 = scalar_lea.vmem %s0, %s272
      %p274 = scmp.lt.s32.totalorder %s18, 1
      %s275 = scalar_select %p274, %s18, 1
      %s276 = smul.addr %s275, 32
      %s277 = smul.addr %s276, 8
      %s278 = scalar_lea.vmem %s7, %s277
      %v279 = vld [vmem:[%s273] sm:$0xff]
      %v280 = vld [vmem:[%s273 + $0x8] sm:$0xff]
      %v281 = vld [vmem:[%s273 + $0x10] sm:$0xff]
      %v282 = vld [vmem:[%s273 + $0x18] sm:$0xff]
      %v283 = vld [vmem:[%s273 + $0x20] sm:$0xff]
      %v284 = vld [vmem:[%s273 + $0x28] sm:$0xff]
      %v285 = vld [vmem:[%s273 + $0x30] sm:$0xff]
      %v286 = vld [vmem:[%s273 + $0x38] sm:$0xff]
      %v287 = vld [vmem:[%s273 + $0x40] sm:$0xff]
      %v288 = vld [vmem:[%s273 + $0x48] sm:$0xff]
      %v289 = vld [vmem:[%s273 + $0x50] sm:$0xff]
      %v290 = vld [vmem:[%s273 + $0x58] sm:$0xff]
      %v291 = vld [vmem:[%s273 + $0x60] sm:$0xff]
      %v292 = vld [vmem:[%s273 + $0x68] sm:$0xff]
      %v293 = vld [vmem:[%s273 + $0x70] sm:$0xff]
      %v294 = vld [vmem:[%s273 + $0x78] sm:$0xff]
      %v295 = vld [vmem:[%s273 + $0x80] sm:$0xff]
      %v296 = vld [vmem:[%s273 + $0x88] sm:$0xff]
      %v297 = vld [vmem:[%s273 + $0x90] sm:$0xff]
      %v298 = vld [vmem:[%s273 + $0x98] sm:$0xff]
      %v299 = vld [vmem:[%s273 + $0xa0] sm:$0xff]
      %v300 = vld [vmem:[%s273 + $0xa8] sm:$0xff]
      %v301 = vld [vmem:[%s273 + $0xb0] sm:$0xff]
      %v302 = vld [vmem:[%s273 + $0xb8] sm:$0xff]
      %v303 = vld [vmem:[%s273 + $0xc0] sm:$0xff]
      %v304 = vld [vmem:[%s273 + $0xc8] sm:$0xff]
      %v305 = vld [vmem:[%s273 + $0xd0] sm:$0xff]
      %v306 = vld [vmem:[%s273 + $0xd8] sm:$0xff]
      %v307 = vld [vmem:[%s273 + $0xe0] sm:$0xff]
      %v308 = vld [vmem:[%s273 + $0xe8] sm:$0xff]
      %v309 = vld [vmem:[%s273 + $0xf0] sm:$0xff]
      %v310 = vld [vmem:[%s273 + $0xf8] sm:$0xff]
      %v311 = vld [vmem:[%s1] sm:$0x1]
      %v313 = vperm.slane %v311, 0
      %v315 = vmul.f32 %v279, %v313
      %v316 = vmul.f32 %v280, %v313
      %v317 = vmul.f32 %v281, %v313
      %v318 = vmul.f32 %v282, %v313
      %v319 = vmul.f32 %v283, %v313
      %v320 = vmul.f32 %v284, %v313
      %v321 = vmul.f32 %v285, %v313
      %v322 = vmul.f32 %v286, %v313
      %v323 = vmul.f32 %v287, %v313
      %v324 = vmul.f32 %v288, %v313
      %v325 = vmul.f32 %v289, %v313
      %v326 = vmul.f32 %v290, %v313
      %v327 = vmul.f32 %v291, %v313
      %v328 = vmul.f32 %v292, %v313
      %v329 = vmul.f32 %v293, %v313
      %v330 = vmul.f32 %v294, %v313
      %v331 = vmul.f32 %v295, %v313
      %v332 = vmul.f32 %v296, %v313
      %v333 = vmul.f32 %v297, %v313
      %v334 = vmul.f32 %v298, %v313
      %v335 = vmul.f32 %v299, %v313
      %v336 = vmul.f32 %v300, %v313
      %v337 = vmul.f32 %v301, %v313
      %v338 = vmul.f32 %v302, %v313
      %v339 = vmul.f32 %v303, %v313
      %v340 = vmul.f32 %v304, %v313
      %v341 = vmul.f32 %v305, %v313
      %v342 = vmul.f32 %v306, %v313
      %v343 = vmul.f32 %v307, %v313
      %v344 = vmul.f32 %v308, %v313
      %v345 = vmul.f32 %v309, %v313
      %v346 = vmul.f32 %v310, %v313
      %v347 = vld [vmem:[%s2] sm:$0x1]
      %v349 = vperm.slane %v347, 0
      %v351 = vadd.f32 %v315, %v349
      %v352 = vadd.f32 %v316, %v349
      %v353 = vadd.f32 %v317, %v349
      %v354 = vadd.f32 %v318, %v349
      %v355 = vadd.f32 %v319, %v349
      %v356 = vadd.f32 %v320, %v349
      %v357 = vadd.f32 %v321, %v349
      %v358 = vadd.f32 %v322, %v349
      %v359 = vadd.f32 %v323, %v349
      %v360 = vadd.f32 %v324, %v349
      %v361 = vadd.f32 %v325, %v349
      %v362 = vadd.f32 %v326, %v349
      %v363 = vadd.f32 %v327, %v349
      %v364 = vadd.f32 %v328, %v349
      %v365 = vadd.f32 %v329, %v349
      %v366 = vadd.f32 %v330, %v349
      %v367 = vadd.f32 %v331, %v349
      %v368 = vadd.f32 %v332, %v349
      %v369 = vadd.f32 %v333, %v349
      %v370 = vadd.f32 %v334, %v349
      %v371 = vadd.f32 %v335, %v349
      %v372 = vadd.f32 %v336, %v349
      %v373 = vadd.f32 %v337, %v349
      %v374 = vadd.f32 %v338, %v349
      %v375 = vadd.f32 %v339, %v349
      %v376 = vadd.f32 %v340, %v349
      %v377 = vadd.f32 %v341, %v349
      %v378 = vadd.f32 %v342, %v349
      %v379 = vadd.f32 %v343, %v349
      %v380 = vadd.f32 %v344, %v349
      %v381 = vadd.f32 %v345, %v349
      %v382 = vadd.f32 %v346, %v349
      %v383 = vmax.f32 %v351, 0.0
      %v384 = vmax.f32 %v352, 0.0
      %v385 = vmax.f32 %v353, 0.0
      %v386 = vmax.f32 %v354, 0.0
      %v387 = vmax.f32 %v355, 0.0
      %v388 = vmax.f32 %v356, 0.0
      %v389 = vmax.f32 %v357, 0.0
      %v390 = vmax.f32 %v358, 0.0
      %v391 = vmax.f32 %v359, 0.0
      %v392 = vmax.f32 %v360, 0.0
      %v393 = vmax.f32 %v361, 0.0
      %v394 = vmax.f32 %v362, 0.0
      %v395 = vmax.f32 %v363, 0.0
      %v396 = vmax.f32 %v364, 0.0
      %v397 = vmax.f32 %v365, 0.0
      %v398 = vmax.f32 %v366, 0.0
      %v399 = vmax.f32 %v367, 0.0
      %v400 = vmax.f32 %v368, 0.0
      %v401 = vmax.f32 %v369, 0.0
      %v402 = vmax.f32 %v370, 0.0
      %v403 = vmax.f32 %v371, 0.0
      %v404 = vmax.f32 %v372, 0.0
      %v405 = vmax.f32 %v373, 0.0
      %v406 = vmax.f32 %v374, 0.0
      %v407 = vmax.f32 %v375, 0.0
      %v408 = vmax.f32 %v376, 0.0
      %v409 = vmax.f32 %v377, 0.0
      %v410 = vmax.f32 %v378, 0.0
      %v411 = vmax.f32 %v379, 0.0
      %v412 = vmax.f32 %v380, 0.0
      %v413 = vmax.f32 %v381, 0.0
      %v414 = vmax.f32 %v382, 0.0
      %v415 = vld [vmem:[%s3] sm:$0xf]
      %v416 = vld [vmem:[%s4] sm:$0x1]
      %v418 = vperm.slane %v416, 0
      %vm420 = vcmask 31744
      %v422 = vsel %vm420, %v383, 0
      %v425 = vsel %vm420, %v384, 0
      %v428 = vsel %vm420, %v385, 0
      %v431 = vsel %vm420, %v386, 0
      %v434 = vsel %vm420, %v387, 0
      %v437 = vsel %vm420, %v388, 0
      %v440 = vsel %vm420, %v389, 0
      %v443 = vsel %vm420, %v390, 0
      %v446 = vsel %vm420, %v391, 0
      %v449 = vsel %vm420, %v392, 0
      %v452 = vsel %vm420, %v393, 0
      %v455 = vsel %vm420, %v394, 0
      %v458 = vsel %vm420, %v395, 0
      %v461 = vsel %vm420, %v396, 0
      %v464 = vsel %vm420, %v397, 0
      %v467 = vsel %vm420, %v398, 0
      %v470 = vsel %vm420, %v399, 0
      %v473 = vsel %vm420, %v400, 0
      %v476 = vsel %vm420, %v401, 0
      %v479 = vsel %vm420, %v402, 0
      %v482 = vsel %vm420, %v403, 0
      %v485 = vsel %vm420, %v404, 0
      %v488 = vsel %vm420, %v405, 0
      %v491 = vsel %vm420, %v406, 0
      %v494 = vsel %vm420, %v407, 0
      %v497 = vsel %vm420, %v408, 0
      %v500 = vsel %vm420, %v409, 0
      %v503 = vsel %vm420, %v410, 0
      %v506 = vsel %vm420, %v411, 0
      %v509 = vsel %vm420, %v412, 0
      %v512 = vsel %vm420, %v413, 0
      %v515 = vsel %vm420, %v414, 0
      %vm517 = vcmask 1043456
      %v519 = vsel %vm517, %v415, 0
      %521 = vmatpush.msra.mxu0 0.0
      %522 = vmatpush.msra.mxu0 0.0
      %523 = vmatpush.msra.mxu0 0.0
      %524 = vmatpush.msra.mxu0 0.0
      %525 = vmatpush.msra.mxu0 0.0
      %526 = vmatpush.msra.mxu0 0.0
      %527 = vmatpush.msra.mxu0 0.0
      %528 = vmatpush.msra.mxu0 0.0
      %529 = vmatpush.msra.mxu0 0.0
      %530 = vmatpush.msra.mxu0 0.0
      %531 = vmatpush.msra.mxu0 0.0
      %532 = vmatpush.msra.mxu0 0.0
      %533 = vmatpush.msra.mxu0 0.0
      %534 = vmatpush.msra.mxu0 0.0
      %535 = vmatpush.msra.mxu0 0.0
      %536 = vmatpush.msra.mxu0 %v519
      %537 = vmatmul.f32.gmra.mxu0 %v422
      %v538 = vpop.f32.mrf.mxu0
      %v539 = vadd.f32 %v418, %v538
      %540 = vmatmul.f32.gmra.mxu0 %v425
      %v541 = vpop.f32.mrf.mxu0
      %v542 = vadd.f32 %v418, %v541
      %543 = vmatmul.f32.gmra.mxu0 %v428
      %v544 = vpop.f32.mrf.mxu0
      %v545 = vadd.f32 %v418, %v544
      %546 = vmatmul.f32.gmra.mxu0 %v431
      %v547 = vpop.f32.mrf.mxu0
      %v548 = vadd.f32 %v418, %v547
      %549 = vmatmul.f32.gmra.mxu0 %v434
      %v550 = vpop.f32.mrf.mxu0
      %v551 = vadd.f32 %v418, %v550
      %552 = vmatmul.f32.gmra.mxu0 %v437
      %v553 = vpop.f32.mrf.mxu0
      %v554 = vadd.f32 %v418, %v553
      %555 = vmatmul.f32.gmra.mxu0 %v440
      %v556 = vpop.f32.mrf.mxu0
      %v557 = vadd.f32 %v418, %v556
      %558 = vmatmul.f32.gmra.mxu0 %v443
      %v559 = vpop.f32.mrf.mxu0
      %v560 = vadd.f32 %v418, %v559
      %561 = vmatmul.f32.gmra.mxu0 %v446
      %v562 = vpop.f32.mrf.mxu0
      %v563 = vadd.f32 %v418, %v562
      %564 = vmatmul.f32.gmra.mxu0 %v449
      %v565 = vpop.f32.mrf.mxu0
      %v566 = vadd.f32 %v418, %v565
      %567 = vmatmul.f32.gmra.mxu0 %v452
      %v568 = vpop.f32.mrf.mxu0
      %v569 = vadd.f32 %v418, %v568
      %570 = vmatmul.f32.gmra.mxu0 %v455
      %v571 = vpop.f32.mrf.mxu0
      %v572 = vadd.f32 %v418, %v571
      %573 = vmatmul.f32.gmra.mxu0 %v458
      %v574 = vpop.f32.mrf.mxu0
      %v575 = vadd.f32 %v418, %v574
      %576 = vmatmul.f32.gmra.mxu0 %v461
      %v577 = vpop.f32.mrf.mxu0
      %v578 = vadd.f32 %v418, %v577
      %579 = vmatmul.f32.gmra.mxu0 %v464
      %v580 = vpop.f32.mrf.mxu0
      %v581 = vadd.f32 %v418, %v580
      %582 = vmatmul.f32.gmra.mxu0 %v467
      %v583 = vpop.f32.mrf.mxu0
      %v584 = vadd.f32 %v418, %v583
      %585 = vmatmul.f32.gmra.mxu0 %v470
      %v586 = vpop.f32.mrf.mxu0
      %v587 = vadd.f32 %v418, %v586
      %588 = vmatmul.f32.gmra.mxu0 %v473
      %v589 = vpop.f32.mrf.mxu0
      %v590 = vadd.f32 %v418, %v589
      %591 = vmatmul.f32.gmra.mxu0 %v476
      %v592 = vpop.f32.mrf.mxu0
      %v593 = vadd.f32 %v418, %v592
      %594 = vmatmul.f32.gmra.mxu0 %v479
      %v595 = vpop.f32.mrf.mxu0
      %v596 = vadd.f32 %v418, %v595
      %597 = vmatmul.f32.gmra.mxu0 %v482
      %v598 = vpop.f32.mrf.mxu0
      %v599 = vadd.f32 %v418, %v598
      %600 = vmatmul.f32.gmra.mxu0 %v485
      %v601 = vpop.f32.mrf.mxu0
      %v602 = vadd.f32 %v418, %v601
      %603 = vmatmul.f32.gmra.mxu0 %v488
      %v604 = vpop.f32.mrf.mxu0
      %v605 = vadd.f32 %v418, %v604
      %606 = vmatmul.f32.gmra.mxu0 %v491
      %v607 = vpop.f32.mrf.mxu0
      %v608 = vadd.f32 %v418, %v607
      %609 = vmatmul.f32.gmra.mxu0 %v494
      %v610 = vpop.f32.mrf.mxu0
      %v611 = vadd.f32 %v418, %v610
      %612 = vmatmul.f32.gmra.mxu0 %v497
      %v613 = vpop.f32.mrf.mxu0
      %v614 = vadd.f32 %v418, %v613
      %615 = vmatmul.f32.gmra.mxu0 %v500
      %v616 = vpop.f32.mrf.mxu0
      %v617 = vadd.f32 %v418, %v616
      %618 = vmatmul.f32.gmra.mxu0 %v503
      %v619 = vpop.f32.mrf.mxu0
      %v620 = vadd.f32 %v418, %v619
      %621 = vmatmul.f32.gmra.mxu0 %v506
      %v622 = vpop.f32.mrf.mxu0
      %v623 = vadd.f32 %v418, %v622
      %624 = vmatmul.f32.gmra.mxu0 %v509
      %v625 = vpop.f32.mrf.mxu0
      %v626 = vadd.f32 %v418, %v625
      %627 = vmatmul.f32.gmra.mxu0 %v512
      %v628 = vpop.f32.mrf.mxu0
      %v629 = vadd.f32 %v418, %v628
      %630 = vmatmul.f32.gmra.mxu0 %v515
      %v631 = vpop.f32.mrf.mxu0
      %v632 = vadd.f32 %v418, %v631
      %633 = vdwg.mxu0
      %v634 = vmax.f32 %v539, 0.0
      %v635 = vmax.f32 %v542, 0.0
      %v636 = vmax.f32 %v545, 0.0
      %v637 = vmax.f32 %v548, 0.0
      %v638 = vmax.f32 %v551, 0.0
      %v639 = vmax.f32 %v554, 0.0
      %v640 = vmax.f32 %v557, 0.0
      %v641 = vmax.f32 %v560, 0.0
      %v642 = vmax.f32 %v563, 0.0
      %v643 = vmax.f32 %v566, 0.0
      %v644 = vmax.f32 %v569, 0.0
      %v645 = vmax.f32 %v572, 0.0
      %v646 = vmax.f32 %v575, 0.0
      %v647 = vmax.f32 %v578, 0.0
      %v648 = vmax.f32 %v581, 0.0
      %v649 = vmax.f32 %v584, 0.0
      %v650 = vmax.f32 %v587, 0.0
      %v651 = vmax.f32 %v590, 0.0
      %v652 = vmax.f32 %v593, 0.0
      %v653 = vmax.f32 %v596, 0.0
      %v654 = vmax.f32 %v599, 0.0
      %v655 = vmax.f32 %v602, 0.0
      %v656 = vmax.f32 %v605, 0.0
      %v657 = vmax.f32 %v608, 0.0
      %v658 = vmax.f32 %v611, 0.0
      %v659 = vmax.f32 %v614, 0.0
      %v660 = vmax.f32 %v617, 0.0
      %v661 = vmax.f32 %v620, 0.0
      %v662 = vmax.f32 %v623, 0.0
      %v663 = vmax.f32 %v626, 0.0
      %v664 = vmax.f32 %v629, 0.0
      %v665 = vmax.f32 %v632, 0.0
      %v666 = vld [vmem:[%s6] sm:$0xff]
      %v667 = vld [vmem:[%s6 + $0x8] sm:$0xff]
      %v668 = vld [vmem:[%s6 + $0x10] sm:$0xff]
      %v669 = vld [vmem:[%s6 + $0x18] sm:$0xff]
      %v670 = vld [vmem:[%s6 + $0x20] sm:$0xff]
      %v671 = vld [vmem:[%s6 + $0x28] sm:$0xff]
      %v672 = vld [vmem:[%s6 + $0x30] sm:$0xff]
      %v673 = vld [vmem:[%s6 + $0x38] sm:$0xff]
      %v674 = vld [vmem:[%s6 + $0x40] sm:$0xff]
      %v675 = vld [vmem:[%s6 + $0x48] sm:$0xff]
      %v676 = vld [vmem:[%s6 + $0x50] sm:$0xff]
      %v677 = vld [vmem:[%s6 + $0x58] sm:$0xff]
      %v678 = vld [vmem:[%s6 + $0x60] sm:$0xff]
      %v679 = vld [vmem:[%s6 + $0x68] sm:$0xff]
      %v680 = vld [vmem:[%s6 + $0x70] sm:$0xff]
      %v681 = vld [vmem:[%s6 + $0x78] sm:$0xff]
      %v682 = vld [vmem:[%s6 + $0x80] sm:$0xff]
      %v683 = vld [vmem:[%s6 + $0x88] sm:$0xff]
      %v684 = vld [vmem:[%s6 + $0x90] sm:$0xff]
      %v685 = vld [vmem:[%s6 + $0x98] sm:$0xff]
      %v686 = vld [vmem:[%s6 + $0xa0] sm:$0xff]
      %v687 = vld [vmem:[%s6 + $0xa8] sm:$0xff]
      %v688 = vld [vmem:[%s6 + $0xb0] sm:$0xff]
      %v689 = vld [vmem:[%s6 + $0xb8] sm:$0xff]
      %v690 = vld [vmem:[%s6 + $0xc0] sm:$0xff]
      %v691 = vld [vmem:[%s6 + $0xc8] sm:$0xff]
      %v692 = vld [vmem:[%s6 + $0xd0] sm:$0xff]
      %v693 = vld [vmem:[%s6 + $0xd8] sm:$0xff]
      %v694 = vld [vmem:[%s6 + $0xe0] sm:$0xff]
      %v695 = vld [vmem:[%s6 + $0xe8] sm:$0xff]
      %v696 = vld [vmem:[%s6 + $0xf0] sm:$0xff]
      %v697 = vld [vmem:[%s6 + $0xf8] sm:$0xff]
      %v698 = vrot.slane %v634, 7
      %v699 = vrot.slane %v635, 7
      %v700 = vrot.slane %v636, 7
      %v701 = vrot.slane %v637, 7
      %v702 = vrot.slane %v638, 7
      %v703 = vrot.slane %v639, 7
      %v704 = vrot.slane %v640, 7
      %v705 = vrot.slane %v641, 7
      %v706 = vrot.slane %v642, 7
      %v707 = vrot.slane %v643, 7
      %v708 = vrot.slane %v644, 7
      %v709 = vrot.slane %v645, 7
      %v710 = vrot.slane %v646, 7
      %v711 = vrot.slane %v647, 7
      %v712 = vrot.slane %v648, 7
      %v713 = vrot.slane %v649, 7
      %v714 = vrot.slane %v650, 7
      %v715 = vrot.slane %v651, 7
      %v716 = vrot.slane %v652, 7
      %v717 = vrot.slane %v653, 7
      %v718 = vrot.slane %v654, 7
      %v719 = vrot.slane %v655, 7
      %v720 = vrot.slane %v656, 7
      %v721 = vrot.slane %v657, 7
      %v722 = vrot.slane %v658, 7
      %v723 = vrot.slane %v659, 7
      %v724 = vrot.slane %v660, 7
      %v725 = vrot.slane %v661, 7
      %v726 = vrot.slane %v662, 7
      %v727 = vrot.slane %v663, 7
      %v728 = vrot.slane %v664, 7
      %v729 = vrot.slane %v665, 7
      %v730 = vlaneseq
      %v731 = vshrl.u32 %v730, 7
      %vm732 = vcmp.lt.s32.totalorder %v731, 1
      %v733 = vsel %vm732, %v728, %v729
      %v734 = vsel %vm732, %v727, %v728
      %v735 = vsel %vm732, %v726, %v727
      %v736 = vsel %vm732, %v725, %v726
      %v737 = vsel %vm732, %v724, %v725
      %v738 = vsel %vm732, %v723, %v724
      %v739 = vsel %vm732, %v722, %v723
      %v740 = vsel %vm732, %v721, %v722
      %v741 = vsel %vm732, %v720, %v721
      %v742 = vsel %vm732, %v719, %v720
      %v743 = vsel %vm732, %v718, %v719
      %v744 = vsel %vm732, %v717, %v718
      %v745 = vsel %vm732, %v716, %v717
      %v746 = vsel %vm732, %v715, %v716
      %v747 = vsel %vm732, %v714, %v715
      %v748 = vsel %vm732, %v713, %v714
      %v749 = vsel %vm732, %v712, %v713
      %v750 = vsel %vm732, %v711, %v712
      %v751 = vsel %vm732, %v710, %v711
      %v752 = vsel %vm732, %v709, %v710
      %v753 = vsel %vm732, %v708, %v709
      %v754 = vsel %vm732, %v707, %v708
      %v755 = vsel %vm732, %v706, %v707
      %v756 = vsel %vm732, %v705, %v706
      %v757 = vsel %vm732, %v704, %v705
      %v758 = vsel %vm732, %v703, %v704
      %v759 = vsel %vm732, %v702, %v703
      %v760 = vsel %vm732, %v701, %v702
      %v761 = vsel %vm732, %v700, %v701
      %v762 = vsel %vm732, %v699, %v700
      %v763 = vsel %vm732, %v698, %v699
      %v764 = vsel %vm732, %v729, %v698
      %v765 = vmul.f32 %v666, %v764
      %v766 = vmul.f32 %v667, %v763
      %v767 = vmul.f32 %v668, %v762
      %v768 = vmul.f32 %v669, %v761
      %v769 = vmul.f32 %v670, %v760
      %v770 = vmul.f32 %v671, %v759
      %v771 = vmul.f32 %v672, %v758
      %v772 = vmul.f32 %v673, %v757
      %v773 = vmul.f32 %v674, %v756
      %v774 = vmul.f32 %v675, %v755
      %v775 = vmul.f32 %v676, %v754
      %v776 = vmul.f32 %v677, %v753
      %v777 = vmul.f32 %v678, %v752
      %v778 = vmul.f32 %v679, %v751
      %v779 = vmul.f32 %v680, %v750
      %v780 = vmul.f32 %v681, %v749
      %v781 = vmul.f32 %v682, %v748
      %v782 = vmul.f32 %v683, %v747
      %v783 = vmul.f32 %v684, %v746
      %v784 = vmul.f32 %v685, %v745
      %v785 = vmul.f32 %v686, %v744
      %v786 = vmul.f32 %v687, %v743
      %v787 = vmul.f32 %v688, %v742
      %v788 = vmul.f32 %v689, %v741
      %v789 = vmul.f32 %v690, %v740
      %v790 = vmul.f32 %v691, %v739
      %v791 = vmul.f32 %v692, %v738
      %v792 = vmul.f32 %v693, %v737
      %v793 = vmul.f32 %v694, %v736
      %v794 = vmul.f32 %v695, %v735
      %v795 = vmul.f32 %v696, %v734
      %v796 = vmul.f32 %v697, %v733
      %s797 = scalar_lea.vmem %s6, 256
      %v798 = vld [vmem:[%s797] sm:$0xff]
      %v799 = vld [vmem:[%s797 + $0x8] sm:$0xff]
      %v800 = vld [vmem:[%s797 + $0x10] sm:$0xff]
      %v801 = vld [vmem:[%s797 + $0x18] sm:$0xff]
      %v802 = vld [vmem:[%s797 + $0x20] sm:$0xff]
      %v803 = vld [vmem:[%s797 + $0x28] sm:$0xff]
      %v804 = vld [vmem:[%s797 + $0x30] sm:$0xff]
      %v805 = vld [vmem:[%s797 + $0x38] sm:$0xff]
      %v806 = vld [vmem:[%s797 + $0x40] sm:$0xff]
      %v807 = vld [vmem:[%s797 + $0x48] sm:$0xff]
      %v808 = vld [vmem:[%s797 + $0x50] sm:$0xff]
      %v809 = vld [vmem:[%s797 + $0x58] sm:$0xff]
      %v810 = vld [vmem:[%s797 + $0x60] sm:$0xff]
      %v811 = vld [vmem:[%s797 + $0x68] sm:$0xff]
      %v812 = vld [vmem:[%s797 + $0x70] sm:$0xff]
      %v813 = vld [vmem:[%s797 + $0x78] sm:$0xff]
      %v814 = vld [vmem:[%s797 + $0x80] sm:$0xff]
      %v815 = vld [vmem:[%s797 + $0x88] sm:$0xff]
      %v816 = vld [vmem:[%s797 + $0x90] sm:$0xff]
      %v817 = vld [vmem:[%s797 + $0x98] sm:$0xff]
      %v818 = vld [vmem:[%s797 + $0xa0] sm:$0xff]
      %v819 = vld [vmem:[%s797 + $0xa8] sm:$0xff]
      %v820 = vld [vmem:[%s797 + $0xb0] sm:$0xff]
      %v821 = vld [vmem:[%s797 + $0xb8] sm:$0xff]
      %v822 = vld [vmem:[%s797 + $0xc0] sm:$0xff]
      %v823 = vld [vmem:[%s797 + $0xc8] sm:$0xff]
      %v824 = vld [vmem:[%s797 + $0xd0] sm:$0xff]
      %v825 = vld [vmem:[%s797 + $0xd8] sm:$0xff]
      %v826 = vld [vmem:[%s797 + $0xe0] sm:$0xff]
      %v827 = vld [vmem:[%s797 + $0xe8] sm:$0xff]
      %v828 = vld [vmem:[%s797 + $0xf0] sm:$0xff]
      %v829 = vld [vmem:[%s797 + $0xf8] sm:$0xff]
      %v830 = vrot.slane %v634, 1
      %v831 = vrot.slane %v635, 1
      %v832 = vrot.slane %v636, 1
      %v833 = vrot.slane %v637, 1
      %v834 = vrot.slane %v638, 1
      %v835 = vrot.slane %v639, 1
      %v836 = vrot.slane %v640, 1
      %v837 = vrot.slane %v641, 1
      %v838 = vrot.slane %v642, 1
      %v839 = vrot.slane %v643, 1
      %v840 = vrot.slane %v644, 1
      %v841 = vrot.slane %v645, 1
      %v842 = vrot.slane %v646, 1
      %v843 = vrot.slane %v647, 1
      %v844 = vrot.slane %v648, 1
      %v845 = vrot.slane %v649, 1
      %v846 = vrot.slane %v650, 1
      %v847 = vrot.slane %v651, 1
      %v848 = vrot.slane %v652, 1
      %v849 = vrot.slane %v653, 1
      %v850 = vrot.slane %v654, 1
      %v851 = vrot.slane %v655, 1
      %v852 = vrot.slane %v656, 1
      %v853 = vrot.slane %v657, 1
      %v854 = vrot.slane %v658, 1
      %v855 = vrot.slane %v659, 1
      %v856 = vrot.slane %v660, 1
      %v857 = vrot.slane %v661, 1
      %v858 = vrot.slane %v662, 1
      %v859 = vrot.slane %v663, 1
      %v860 = vrot.slane %v664, 1
      %v861 = vrot.slane %v665, 1
      %vm862 = vcmp.lt.s32.totalorder %v731, 7
      %v863 = vsel %vm862, %v860, %v861
      %v864 = vsel %vm862, %v859, %v860
      %v865 = vsel %vm862, %v858, %v859
      %v866 = vsel %vm862, %v857, %v858
      %v867 = vsel %vm862, %v856, %v857
      %v868 = vsel %vm862, %v855, %v856
      %v869 = vsel %vm862, %v854, %v855
      %v870 = vsel %vm862, %v853, %v854
      %v871 = vsel %vm862, %v852, %v853
      %v872 = vsel %vm862, %v851, %v852
      %v873 = vsel %vm862, %v850, %v851
      %v874 = vsel %vm862, %v849, %v850
      %v875 = vsel %vm862, %v848, %v849
      %v876 = vsel %vm862, %v847, %v848
      %v877 = vsel %vm862, %v846, %v847
      %v878 = vsel %vm862, %v845, %v846
      %v879 = vsel %vm862, %v844, %v845
      %v880 = vsel %vm862, %v843, %v844
      %v881 = vsel %vm862, %v842, %v843
      %v882 = vsel %vm862, %v841, %v842
      %v883 = vsel %vm862, %v840, %v841
      %v884 = vsel %vm862, %v839, %v840
      %v885 = vsel %vm862, %v838, %v839
      %v886 = vsel %vm862, %v837, %v838
      %v887 = vsel %vm862, %v836, %v837
      %v888 = vsel %vm862, %v835, %v836
      %v889 = vsel %vm862, %v834, %v835
      %v890 = vsel %vm862, %v833, %v834
      %v891 = vsel %vm862, %v832, %v833
      %v892 = vsel %vm862, %v831, %v832
      %v893 = vsel %vm862, %v830, %v831
      %v894 = vsel %vm862, %v861, %v830
      %v895 = vmul.f32 %v798, %v893
      %v896 = vmul.f32 %v799, %v892
      %v897 = vmul.f32 %v800, %v891
      %v898 = vmul.f32 %v801, %v890
      %v899 = vmul.f32 %v802, %v889
      %v900 = vmul.f32 %v803, %v888
      %v901 = vmul.f32 %v804, %v887
      %v902 = vmul.f32 %v805, %v886
      %v903 = vmul.f32 %v806, %v885
      %v904 = vmul.f32 %v807, %v884
      %v905 = vmul.f32 %v808, %v883
      %v906 = vmul.f32 %v809, %v882
      %v907 = vmul.f32 %v810, %v881
      %v908 = vmul.f32 %v811, %v880
      %v909 = vmul.f32 %v812, %v879
      %v910 = vmul.f32 %v813, %v878
      %v911 = vmul.f32 %v814, %v877
      %v912 = vmul.f32 %v815, %v876
      %v913 = vmul.f32 %v816, %v875
      %v914 = vmul.f32 %v817, %v874
      %v915 = vmul.f32 %v818, %v873
      %v916 = vmul.f32 %v819, %v872
      %v917 = vmul.f32 %v820, %v871
      %v918 = vmul.f32 %v821, %v870
      %v919 = vmul.f32 %v822, %v869
      %v920 = vmul.f32 %v823, %v868
      %v921 = vmul.f32 %v824, %v867
      %v922 = vmul.f32 %v825, %v866
      %v923 = vmul.f32 %v826, %v865
      %v924 = vmul.f32 %v827, %v864
      %v925 = vmul.f32 %v828, %v863
      %v926 = vmul.f32 %v829, %v894
      %958 = vrot.lane.b32.xlu0 0.0, 32
      %v959 = vpop.permute.xlu0 %958
      %960 = vrot.lane.b32.xlu0 %v634, 32
      %v961 = vpop.permute.xlu0 %960
      %962 = vrot.lane.b32.xlu0 %v635, 32
      %v963 = vpop.permute.xlu0 %962
      %964 = vrot.lane.b32.xlu0 %v636, 32
      %v965 = vpop.permute.xlu0 %964
      %966 = vrot.lane.b32.xlu0 %v637, 32
      %v967 = vpop.permute.xlu0 %966
      %968 = vrot.lane.b32.xlu0 %v638, 32
      %v969 = vpop.permute.xlu0 %968
      %970 = vrot.lane.b32.xlu0 %v639, 32
      %v971 = vpop.permute.xlu0 %970
      %972 = vrot.lane.b32.xlu0 %v640, 32
      %v973 = vpop.permute.xlu0 %972
      %974 = vrot.lane.b32.xlu0 %v641, 32
      %v975 = vpop.permute.xlu0 %974
      %976 = vrot.lane.b32.xlu0 %v642, 32
      %v977 = vpop.permute.xlu0 %976
      %978 = vrot.lane.b32.xlu0 %v643, 32
      %v979 = vpop.permute.xlu0 %978
      %980 = vrot.lane.b32.xlu0 %v644, 32
      %v981 = vpop.permute.xlu0 %980
      %982 = vrot.lane.b32.xlu0 %v645, 32
      %v983 = vpop.permute.xlu0 %982
      %984 = vrot.lane.b32.xlu0 %v646, 32
      %v985 = vpop.permute.xlu0 %984
      %986 = vrot.lane.b32.xlu0 %v647, 32
      %v987 = vpop.permute.xlu0 %986
      %988 = vrot.lane.b32.xlu0 %v648, 32
      %v989 = vpop.permute.xlu0 %988
      %990 = vrot.lane.b32.xlu0 %v649, 32
      %v991 = vpop.permute.xlu0 %990
      %992 = vrot.lane.b32.xlu0 %v650, 32
      %v993 = vpop.permute.xlu0 %992
      %994 = vrot.lane.b32.xlu0 %v651, 32
      %v995 = vpop.permute.xlu0 %994
      %996 = vrot.lane.b32.xlu0 %v652, 32
      %v997 = vpop.permute.xlu0 %996
      %998 = vrot.lane.b32.xlu0 %v653, 32
      %v999 = vpop.permute.xlu0 %998
      %1000 = vrot.lane.b32.xlu0 %v654, 32
      %v1001 = vpop.permute.xlu0 %1000
      %1002 = vrot.lane.b32.xlu0 %v655, 32
      %v1003 = vpop.permute.xlu0 %1002
      %1004 = vrot.lane.b32.xlu0 %v656, 32
      %v1005 = vpop.permute.xlu0 %1004
      %1006 = vrot.lane.b32.xlu0 %v657, 32
      %v1007 = vpop.permute.xlu0 %1006
      %1008 = vrot.lane.b32.xlu0 %v658, 32
      %v1009 = vpop.permute.xlu0 %1008
      %1010 = vrot.lane.b32.xlu0 %v659, 32
      %v1011 = vpop.permute.xlu0 %1010
      %1012 = vrot.lane.b32.xlu0 %v660, 32
      %v1013 = vpop.permute.xlu0 %1012
      %1014 = vrot.lane.b32.xlu0 %v661, 32
      %v1015 = vpop.permute.xlu0 %1014
      %1016 = vrot.lane.b32.xlu0 %v662, 32
      %v1017 = vpop.permute.xlu0 %1016
      %1018 = vrot.lane.b32.xlu0 %v663, 32
      %v1019 = vpop.permute.xlu0 %1018
      %1081 = vrot.lane.b32.xlu0 0.0, 64
      %v1082 = vpop.permute.xlu0 %1081
      %1083 = vrot.lane.b32.xlu0 %v895, 64
      %v1084 = vpop.permute.xlu0 %1083
      %1085 = vrot.lane.b32.xlu0 %v896, 64
      %v1086 = vpop.permute.xlu0 %1085
      %1087 = vrot.lane.b32.xlu0 %v897, 64
      %v1088 = vpop.permute.xlu0 %1087
      %1089 = vrot.lane.b32.xlu0 %v898, 64
      %v1090 = vpop.permute.xlu0 %1089
      %1091 = vrot.lane.b32.xlu0 %v899, 64
      %v1092 = vpop.permute.xlu0 %1091
      %1093 = vrot.lane.b32.xlu0 %v900, 64
      %v1094 = vpop.permute.xlu0 %1093
      %1095 = vrot.lane.b32.xlu0 %v901, 64
      %v1096 = vpop.permute.xlu0 %1095
      %1097 = vrot.lane.b32.xlu0 %v902, 64
      %v1098 = vpop.permute.xlu0 %1097
      %1099 = vrot.lane.b32.xlu0 %v903, 64
      %v1100 = vpop.permute.xlu0 %1099
      %1101 = vrot.lane.b32.xlu0 %v904, 64
      %v1102 = vpop.permute.xlu0 %1101
      %1103 = vrot.lane.b32.xlu0 %v905, 64
      %v1104 = vpop.permute.xlu0 %1103
      %1105 = vrot.lane.b32.xlu0 %v906, 64
      %v1106 = vpop.permute.xlu0 %1105
      %1107 = vrot.lane.b32.xlu0 %v907, 64
      %v1108 = vpop.permute.xlu0 %1107
      %1109 = vrot.lane.b32.xlu0 %v908, 64
      %v1110 = vpop.permute.xlu0 %1109
      %1111 = vrot.lane.b32.xlu0 %v909, 64
      %v1112 = vpop.permute.xlu0 %1111
      %1113 = vrot.lane.b32.xlu0 %v910, 64
      %v1114 = vpop.permute.xlu0 %1113
      %1115 = vrot.lane.b32.xlu0 %v911, 64
      %v1116 = vpop.permute.xlu0 %1115
      %1117 = vrot.lane.b32.xlu0 %v912, 64
      %v1118 = vpop.permute.xlu0 %1117
      %1119 = vrot.lane.b32.xlu0 %v913, 64
      %v1120 = vpop.permute.xlu0 %1119
      %1121 = vrot.lane.b32.xlu0 %v914, 64
      %v1122 = vpop.permute.xlu0 %1121
      %1123 = vrot.lane.b32.xlu0 %v915, 64
      %v1124 = vpop.permute.xlu0 %1123
      %1125 = vrot.lane.b32.xlu0 %v916, 64
      %v1126 = vpop.permute.xlu0 %1125
      %1127 = vrot.lane.b32.xlu0 %v917, 64
      %v1128 = vpop.permute.xlu0 %1127
      %1129 = vrot.lane.b32.xlu0 %v918, 64
      %v1130 = vpop.permute.xlu0 %1129
      %1131 = vrot.lane.b32.xlu0 %v919, 64
      %v1132 = vpop.permute.xlu0 %1131
      %1133 = vrot.lane.b32.xlu0 %v920, 64
      %v1134 = vpop.permute.xlu0 %1133
      %1135 = vrot.lane.b32.xlu0 %v921, 64
      %v1136 = vpop.permute.xlu0 %1135
      %1137 = vrot.lane.b32.xlu0 %v922, 64
      %v1138 = vpop.permute.xlu0 %1137
      %1139 = vrot.lane.b32.xlu0 %v923, 64
      %v1140 = vpop.permute.xlu0 %1139
      %1141 = vrot.lane.b32.xlu0 %v924, 64
      %v1142 = vpop.permute.xlu0 %1141
      %1206 = vrot.lane.b32.xlu0 %v765, 96
      %v1207 = vpop.permute.xlu0 %1206
      %1208 = vrot.lane.b32.xlu0 %v766, 96
      %v1209 = vpop.permute.xlu0 %1208
      %1210 = vrot.lane.b32.xlu0 %v767, 96
      %v1211 = vpop.permute.xlu0 %1210
      %1212 = vrot.lane.b32.xlu0 %v768, 96
      %v1213 = vpop.permute.xlu0 %1212
      %1214 = vrot.lane.b32.xlu0 %v769, 96
      %v1215 = vpop.permute.xlu0 %1214
      %1216 = vrot.lane.b32.xlu0 %v770, 96
      %v1217 = vpop.permute.xlu0 %1216
      %1218 = vrot.lane.b32.xlu0 %v771, 96
      %v1219 = vpop.permute.xlu0 %1218
      %1220 = vrot.lane.b32.xlu0 %v772, 96
      %v1221 = vpop.permute.xlu0 %1220
      %1222 = vrot.lane.b32.xlu0 %v773, 96
      %v1223 = vpop.permute.xlu0 %1222
      %1224 = vrot.lane.b32.xlu0 %v774, 96
      %v1225 = vpop.permute.xlu0 %1224
      %1226 = vrot.lane.b32.xlu0 %v775, 96
      %v1227 = vpop.permute.xlu0 %1226
      %1228 = vrot.lane.b32.xlu0 %v776, 96
      %v1229 = vpop.permute.xlu0 %1228
      %1230 = vrot.lane.b32.xlu0 %v777, 96
      %v1231 = vpop.permute.xlu0 %1230
      %1232 = vrot.lane.b32.xlu0 %v778, 96
      %v1233 = vpop.permute.xlu0 %1232
      %1234 = vrot.lane.b32.xlu0 %v779, 96
      %v1235 = vpop.permute.xlu0 %1234
      %1236 = vrot.lane.b32.xlu0 %v780, 96
      %v1237 = vpop.permute.xlu0 %1236
      %1238 = vrot.lane.b32.xlu0 %v781, 96
      %v1239 = vpop.permute.xlu0 %1238
      %1240 = vrot.lane.b32.xlu0 %v782, 96
      %v1241 = vpop.permute.xlu0 %1240
      %1242 = vrot.lane.b32.xlu0 %v783, 96
      %v1243 = vpop.permute.xlu0 %1242
      %1244 = vrot.lane.b32.xlu0 %v784, 96
      %v1245 = vpop.permute.xlu0 %1244
      %1246 = vrot.lane.b32.xlu0 %v785, 96
      %v1247 = vpop.permute.xlu0 %1246
      %1248 = vrot.lane.b32.xlu0 %v786, 96
      %v1249 = vpop.permute.xlu0 %1248
      %1250 = vrot.lane.b32.xlu0 %v787, 96
      %v1251 = vpop.permute.xlu0 %1250
      %1252 = vrot.lane.b32.xlu0 %v788, 96
      %v1253 = vpop.permute.xlu0 %1252
      %1254 = vrot.lane.b32.xlu0 %v789, 96
      %v1255 = vpop.permute.xlu0 %1254
      %1256 = vrot.lane.b32.xlu0 %v790, 96
      %v1257 = vpop.permute.xlu0 %1256
      %1258 = vrot.lane.b32.xlu0 %v791, 96
      %v1259 = vpop.permute.xlu0 %1258
      %1260 = vrot.lane.b32.xlu0 %v792, 96
      %v1261 = vpop.permute.xlu0 %1260
      %1262 = vrot.lane.b32.xlu0 %v793, 96
      %v1263 = vpop.permute.xlu0 %1262
      %1264 = vrot.lane.b32.xlu0 %v794, 96
      %v1265 = vpop.permute.xlu0 %1264
      %1266 = vrot.lane.b32.xlu0 %v795, 96
      %v1267 = vpop.permute.xlu0 %1266
      %1268 = vrot.lane.b32.xlu0 %v796, 96
      %v1269 = vpop.permute.xlu0 %1268
      %1304 = vrot.lane.b32.xlu0 %v895, 32
      %v1305 = vpop.permute.xlu0 %1304
      %1306 = vrot.lane.b32.xlu0 %v896, 32
      %v1307 = vpop.permute.xlu0 %1306
      %1308 = vrot.lane.b32.xlu0 %v897, 32
      %v1309 = vpop.permute.xlu0 %1308
      %1310 = vrot.lane.b32.xlu0 %v898, 32
      %v1311 = vpop.permute.xlu0 %1310
      %1312 = vrot.lane.b32.xlu0 %v899, 32
      %v1313 = vpop.permute.xlu0 %1312
      %1314 = vrot.lane.b32.xlu0 %v900, 32
      %v1315 = vpop.permute.xlu0 %1314
      %1316 = vrot.lane.b32.xlu0 %v901, 32
      %v1317 = vpop.permute.xlu0 %1316
      %1318 = vrot.lane.b32.xlu0 %v902, 32
      %v1319 = vpop.permute.xlu0 %1318
      %1320 = vrot.lane.b32.xlu0 %v903, 32
      %v1321 = vpop.permute.xlu0 %1320
      %1322 = vrot.lane.b32.xlu0 %v904, 32
      %v1323 = vpop.permute.xlu0 %1322
      %1324 = vrot.lane.b32.xlu0 %v905, 32
      %v1325 = vpop.permute.xlu0 %1324
      %1326 = vrot.lane.b32.xlu0 %v906, 32
      %v1327 = vpop.permute.xlu0 %1326
      %1328 = vrot.lane.b32.xlu0 %v907, 32
      %v1329 = vpop.permute.xlu0 %1328
      %1330 = vrot.lane.b32.xlu0 %v908, 32
      %v1331 = vpop.permute.xlu0 %1330
      %1332 = vrot.lane.b32.xlu0 %v909, 32
      %v1333 = vpop.permute.xlu0 %1332
      %1334 = vrot.lane.b32.xlu0 %v910, 32
      %v1335 = vpop.permute.xlu0 %1334
      %1336 = vrot.lane.b32.xlu0 %v911, 32
      %v1337 = vpop.permute.xlu0 %1336
      %1338 = vrot.lane.b32.xlu0 %v912, 32
      %v1339 = vpop.permute.xlu0 %1338
      %1340 = vrot.lane.b32.xlu0 %v913, 32
      %v1341 = vpop.permute.xlu0 %1340
      %1342 = vrot.lane.b32.xlu0 %v914, 32
      %v1343 = vpop.permute.xlu0 %1342
      %1344 = vrot.lane.b32.xlu0 %v915, 32
      %v1345 = vpop.permute.xlu0 %1344
      %1346 = vrot.lane.b32.xlu0 %v916, 32
      %v1347 = vpop.permute.xlu0 %1346
      %1348 = vrot.lane.b32.xlu0 %v917, 32
      %v1349 = vpop.permute.xlu0 %1348
      %1350 = vrot.lane.b32.xlu0 %v918, 32
      %v1351 = vpop.permute.xlu0 %1350
      %1352 = vrot.lane.b32.xlu0 %v919, 32
      %v1353 = vpop.permute.xlu0 %1352
      %1354 = vrot.lane.b32.xlu0 %v920, 32
      %v1355 = vpop.permute.xlu0 %1354
      %1356 = vrot.lane.b32.xlu0 %v921, 32
      %v1357 = vpop.permute.xlu0 %1356
      %1358 = vrot.lane.b32.xlu0 %v922, 32
      %v1359 = vpop.permute.xlu0 %1358
      %1360 = vrot.lane.b32.xlu0 %v923, 32
      %v1361 = vpop.permute.xlu0 %1360
      %1362 = vrot.lane.b32.xlu0 %v924, 32
      %v1363 = vpop.permute.xlu0 %1362
      %1364 = vrot.lane.b32.xlu0 %v925, 32
      %v1365 = vpop.permute.xlu0 %1364
      %1366 = vrot.lane.b32.xlu0 %v926, 32
      %v1367 = vpop.permute.xlu0 %1366
      %1400 = vrot.lane.b32.xlu0 %v767, 64
      %v1401 = vpop.permute.xlu0 %1400
      %1402 = vrot.lane.b32.xlu0 %v768, 64
      %v1403 = vpop.permute.xlu0 %1402
      %1404 = vrot.lane.b32.xlu0 %v769, 64
      %v1405 = vpop.permute.xlu0 %1404
      %1406 = vrot.lane.b32.xlu0 %v770, 64
      %v1407 = vpop.permute.xlu0 %1406
      %1408 = vrot.lane.b32.xlu0 %v771, 64
      %v1409 = vpop.permute.xlu0 %1408
      %1410 = vrot.lane.b32.xlu0 %v772, 64
      %v1411 = vpop.permute.xlu0 %1410
      %1412 = vrot.lane.b32.xlu0 %v773, 64
      %v1413 = vpop.permute.xlu0 %1412
      %1414 = vrot.lane.b32.xlu0 %v774, 64
      %v1415 = vpop.permute.xlu0 %1414
      %1416 = vrot.lane.b32.xlu0 %v775, 64
      %v1417 = vpop.permute.xlu0 %1416
      %1418 = vrot.lane.b32.xlu0 %v776, 64
      %v1419 = vpop.permute.xlu0 %1418
      %1420 = vrot.lane.b32.xlu0 %v777, 64
      %v1421 = vpop.permute.xlu0 %1420
      %1422 = vrot.lane.b32.xlu0 %v778, 64
      %v1423 = vpop.permute.xlu0 %1422
      %1424 = vrot.lane.b32.xlu0 %v779, 64
      %v1425 = vpop.permute.xlu0 %1424
      %1426 = vrot.lane.b32.xlu0 %v780, 64
      %v1427 = vpop.permute.xlu0 %1426
      %1428 = vrot.lane.b32.xlu0 %v781, 64
      %v1429 = vpop.permute.xlu0 %1428
      %1430 = vrot.lane.b32.xlu0 %v782, 64
      %v1431 = vpop.permute.xlu0 %1430
      %1432 = vrot.lane.b32.xlu0 %v783, 64
      %v1433 = vpop.permute.xlu0 %1432
      %1434 = vrot.lane.b32.xlu0 %v784, 64
      %v1435 = vpop.permute.xlu0 %1434
      %1436 = vrot.lane.b32.xlu0 %v785, 64
      %v1437 = vpop.permute.xlu0 %1436
      %1438 = vrot.lane.b32.xlu0 %v786, 64
      %v1439 = vpop.permute.xlu0 %1438
      %1440 = vrot.lane.b32.xlu0 %v787, 64
      %v1441 = vpop.permute.xlu0 %1440
      %1442 = vrot.lane.b32.xlu0 %v788, 64
      %v1443 = vpop.permute.xlu0 %1442
      %1444 = vrot.lane.b32.xlu0 %v789, 64
      %v1445 = vpop.permute.xlu0 %1444
      %1446 = vrot.lane.b32.xlu0 %v790, 64
      %v1447 = vpop.permute.xlu0 %1446
      %1448 = vrot.lane.b32.xlu0 %v791, 64
      %v1449 = vpop.permute.xlu0 %1448
      %1450 = vrot.lane.b32.xlu0 %v792, 64
      %v1451 = vpop.permute.xlu0 %1450
      %1452 = vrot.lane.b32.xlu0 %v793, 64
      %v1453 = vpop.permute.xlu0 %1452
      %1454 = vrot.lane.b32.xlu0 %v794, 64
      %v1455 = vpop.permute.xlu0 %1454
      %1456 = vrot.lane.b32.xlu0 %v795, 64
      %v1457 = vpop.permute.xlu0 %1456
      %1458 = vrot.lane.b32.xlu0 %v796, 64
      %v1459 = vpop.permute.xlu0 %1458
      %1492 = vrot.lane.b32.xlu0 %v636, 96
      %v1493 = vpop.permute.xlu0 %1492
      %1494 = vrot.lane.b32.xlu0 %v637, 96
      %v1495 = vpop.permute.xlu0 %1494
      %1496 = vrot.lane.b32.xlu0 %v638, 96
      %v1497 = vpop.permute.xlu0 %1496
      %1498 = vrot.lane.b32.xlu0 %v639, 96
      %v1499 = vpop.permute.xlu0 %1498
      %1500 = vrot.lane.b32.xlu0 %v640, 96
      %v1501 = vpop.permute.xlu0 %1500
      %1502 = vrot.lane.b32.xlu0 %v641, 96
      %v1503 = vpop.permute.xlu0 %1502
      %1504 = vrot.lane.b32.xlu0 %v642, 96
      %v1505 = vpop.permute.xlu0 %1504
      %1506 = vrot.lane.b32.xlu0 %v643, 96
      %v1507 = vpop.permute.xlu0 %1506
      %1508 = vrot.lane.b32.xlu0 %v644, 96
      %v1509 = vpop.permute.xlu0 %1508
      %1510 = vrot.lane.b32.xlu0 %v645, 96
      %v1511 = vpop.permute.xlu0 %1510
      %1512 = vrot.lane.b32.xlu0 %v646, 96
      %v1513 = vpop.permute.xlu0 %1512
      %1514 = vrot.lane.b32.xlu0 %v647, 96
      %v1515 = vpop.permute.xlu0 %1514
      %1516 = vrot.lane.b32.xlu0 %v648, 96
      %v1517 = vpop.permute.xlu0 %1516
      %1518 = vrot.lane.b32.xlu0 %v649, 96
      %v1519 = vpop.permute.xlu0 %1518
      %1520 = vrot.lane.b32.xlu0 %v650, 96
      %v1521 = vpop.permute.xlu0 %1520
      %1522 = vrot.lane.b32.xlu0 %v651, 96
      %v1523 = vpop.permute.xlu0 %1522
      %1524 = vrot.lane.b32.xlu0 %v652, 96
      %v1525 = vpop.permute.xlu0 %1524
      %1526 = vrot.lane.b32.xlu0 %v653, 96
      %v1527 = vpop.permute.xlu0 %1526
      %1528 = vrot.lane.b32.xlu0 %v654, 96
      %v1529 = vpop.permute.xlu0 %1528
      %1530 = vrot.lane.b32.xlu0 %v655, 96
      %v1531 = vpop.permute.xlu0 %1530
      %1532 = vrot.lane.b32.xlu0 %v656, 96
      %v1533 = vpop.permute.xlu0 %1532
      %1534 = vrot.lane.b32.xlu0 %v657, 96
      %v1535 = vpop.permute.xlu0 %1534
      %1536 = vrot.lane.b32.xlu0 %v658, 96
      %v1537 = vpop.permute.xlu0 %1536
      %1538 = vrot.lane.b32.xlu0 %v659, 96
      %v1539 = vpop.permute.xlu0 %1538
      %1540 = vrot.lane.b32.xlu0 %v660, 96
      %v1541 = vpop.permute.xlu0 %1540
      %1542 = vrot.lane.b32.xlu0 %v661, 96
      %v1543 = vpop.permute.xlu0 %1542
      %1544 = vrot.lane.b32.xlu0 %v662, 96
      %v1545 = vpop.permute.xlu0 %1544
      %1546 = vrot.lane.b32.xlu0 %v663, 96
      %v1547 = vpop.permute.xlu0 %1546
      %1548 = vrot.lane.b32.xlu0 %v664, 96
      %v1549 = vpop.permute.xlu0 %1548
      %1550 = vrot.lane.b32.xlu0 %v665, 96
      %v1551 = vpop.permute.xlu0 %1550
      %1552 = vrot.lane.b32.xlu0 0.0, 96
      %v1553 = vpop.permute.xlu0 %1552
      %vm1585 = vcmask 261120
      %v1586 = vsel %vm1585, 0.0, %v959
      %v1587 = vsel %vm1585, %v765, %v961
      %v1588 = vsel %vm1585, %v766, %v963
      %v1589 = vsel %vm1585, %v767, %v965
      %v1590 = vsel %vm1585, %v768, %v967
      %v1591 = vsel %vm1585, %v769, %v969
      %v1592 = vsel %vm1585, %v770, %v971
      %v1593 = vsel %vm1585, %v771, %v973
      %v1594 = vsel %vm1585, %v772, %v975
      %v1595 = vsel %vm1585, %v773, %v977
      %v1596 = vsel %vm1585, %v774, %v979
      %v1597 = vsel %vm1585, %v775, %v981
      %v1598 = vsel %vm1585, %v776, %v983
      %v1599 = vsel %vm1585, %v777, %v985
      %v1600 = vsel %vm1585, %v778, %v987
      %v1601 = vsel %vm1585, %v779, %v989
      %v1602 = vsel %vm1585, %v780, %v991
      %v1603 = vsel %vm1585, %v781, %v993
      %v1604 = vsel %vm1585, %v782, %v995
      %v1605 = vsel %vm1585, %v783, %v997
      %v1606 = vsel %vm1585, %v784, %v999
      %v1607 = vsel %vm1585, %v785, %v1001
      %v1608 = vsel %vm1585, %v786, %v1003
      %v1609 = vsel %vm1585, %v787, %v1005
      %v1610 = vsel %vm1585, %v788, %v1007
      %v1611 = vsel %vm1585, %v789, %v1009
      %v1612 = vsel %vm1585, %v790, %v1011
      %v1613 = vsel %vm1585, %v791, %v1013
      %v1614 = vsel %vm1585, %v792, %v1015
      %v1615 = vsel %vm1585, %v793, %v1017
      %v1616 = vsel %vm1585, %v794, %v1019
      %vm1617 = vcmask 523264
      %v1618 = vsel %vm1617, %v1586, %v1082
      %v1619 = vsel %vm1617, %v1587, %v1084
      %v1620 = vsel %vm1617, %v1588, %v1086
      %v1621 = vsel %vm1617, %v1589, %v1088
      %v1622 = vsel %vm1617, %v1590, %v1090
      %v1623 = vsel %vm1617, %v1591, %v1092
      %v1624 = vsel %vm1617, %v1592, %v1094
      %v1625 = vsel %vm1617, %v1593, %v1096
      %v1626 = vsel %vm1617, %v1594, %v1098
      %v1627 = vsel %vm1617, %v1595, %v1100
      %v1628 = vsel %vm1617, %v1596, %v1102
      %v1629 = vsel %vm1617, %v1597, %v1104
      %v1630 = vsel %vm1617, %v1598, %v1106
      %v1631 = vsel %vm1617, %v1599, %v1108
      %v1632 = vsel %vm1617, %v1600, %v1110
      %v1633 = vsel %vm1617, %v1601, %v1112
      %v1634 = vsel %vm1617, %v1602, %v1114
      %v1635 = vsel %vm1617, %v1603, %v1116
      %v1636 = vsel %vm1617, %v1604, %v1118
      %v1637 = vsel %vm1617, %v1605, %v1120
      %v1638 = vsel %vm1617, %v1606, %v1122
      %v1639 = vsel %vm1617, %v1607, %v1124
      %v1640 = vsel %vm1617, %v1608, %v1126
      %v1641 = vsel %vm1617, %v1609, %v1128
      %v1642 = vsel %vm1617, %v1610, %v1130
      %v1643 = vsel %vm1617, %v1611, %v1132
      %v1644 = vsel %vm1617, %v1612, %v1134
      %v1645 = vsel %vm1617, %v1613, %v1136
      %v1646 = vsel %vm1617, %v1614, %v1138
      %v1647 = vsel %vm1617, %v1615, %v1140
      %v1648 = vsel %vm1617, %v1616, %v1142
      %vm1649 = vcmask 785408
      %v1650 = vsel %vm1649, %v1618, %v1207
      %v1651 = vsel %vm1649, %v1618, %v1209
      %v1652 = vsel %vm1649, %v1619, %v1211
      %v1653 = vsel %vm1649, %v1620, %v1213
      %v1654 = vsel %vm1649, %v1621, %v1215
      %v1655 = vsel %vm1649, %v1622, %v1217
      %v1656 = vsel %vm1649, %v1623, %v1219
      %v1657 = vsel %vm1649, %v1624, %v1221
      %v1658 = vsel %vm1649, %v1625, %v1223
      %v1659 = vsel %vm1649, %v1626, %v1225
      %v1660 = vsel %vm1649, %v1627, %v1227
      %v1661 = vsel %vm1649, %v1628, %v1229
      %v1662 = vsel %vm1649, %v1629, %v1231
      %v1663 = vsel %vm1649, %v1630, %v1233
      %v1664 = vsel %vm1649, %v1631, %v1235
      %v1665 = vsel %vm1649, %v1632, %v1237
      %v1666 = vsel %vm1649, %v1633, %v1239
      %v1667 = vsel %vm1649, %v1634, %v1241
      %v1668 = vsel %vm1649, %v1635, %v1243
      %v1669 = vsel %vm1649, %v1636, %v1245
      %v1670 = vsel %vm1649, %v1637, %v1247
      %v1671 = vsel %vm1649, %v1638, %v1249
      %v1672 = vsel %vm1649, %v1639, %v1251
      %v1673 = vsel %vm1649, %v1640, %v1253
      %v1674 = vsel %vm1649, %v1641, %v1255
      %v1675 = vsel %vm1649, %v1642, %v1257
      %v1676 = vsel %vm1649, %v1643, %v1259
      %v1677 = vsel %vm1649, %v1644, %v1261
      %v1678 = vsel %vm1649, %v1645, %v1263
      %v1679 = vsel %vm1649, %v1646, %v1265
      %v1680 = vsel %vm1649, %v1647, %v1267
      %v1681 = vsel %vm1649, %v1648, %v1269
      %v1682 = vsel %vm1585, %v634, %v1305
      %v1683 = vsel %vm1585, %v635, %v1307
      %v1684 = vsel %vm1585, %v636, %v1309
      %v1685 = vsel %vm1585, %v637, %v1311
      %v1686 = vsel %vm1585, %v638, %v1313
      %v1687 = vsel %vm1585, %v639, %v1315
      %v1688 = vsel %vm1585, %v640, %v1317
      %v1689 = vsel %vm1585, %v641, %v1319
      %v1690 = vsel %vm1585, %v642, %v1321
      %v1691 = vsel %vm1585, %v643, %v1323
      %v1692 = vsel %vm1585, %v644, %v1325
      %v1693 = vsel %vm1585, %v645, %v1327
      %v1694 = vsel %vm1585, %v646, %v1329
      %v1695 = vsel %vm1585, %v647, %v1331
      %v1696 = vsel %vm1585, %v648, %v1333
      %v1697 = vsel %vm1585, %v649, %v1335
      %v1698 = vsel %vm1585, %v650, %v1337
      %v1699 = vsel %vm1585, %v651, %v1339
      %v1700 = vsel %vm1585, %v652, %v1341
      %v1701 = vsel %vm1585, %v653, %v1343
      %v1702 = vsel %vm1585, %v654, %v1345
      %v1703 = vsel %vm1585, %v655, %v1347
      %v1704 = vsel %vm1585, %v656, %v1349
      %v1705 = vsel %vm1585, %v657, %v1351
      %v1706 = vsel %vm1585, %v658, %v1353
      %v1707 = vsel %vm1585, %v659, %v1355
      %v1708 = vsel %vm1585, %v660, %v1357
      %v1709 = vsel %vm1585, %v661, %v1359
      %v1710 = vsel %vm1585, %v662, %v1361
      %v1711 = vsel %vm1585, %v663, %v1363
      %v1712 = vsel %vm1585, %v664, %v1365
      %v1713 = vsel %vm1585, %v665, %v1367
      %v1714 = vsel %vm1617, %v1682, %v1401
      %v1715 = vsel %vm1617, %v1683, %v1403
      %v1716 = vsel %vm1617, %v1684, %v1405
      %v1717 = vsel %vm1617, %v1685, %v1407
      %v1718 = vsel %vm1617, %v1686, %v1409
      %v1719 = vsel %vm1617, %v1687, %v1411
      %v1720 = vsel %vm1617, %v1688, %v1413
      %v1721 = vsel %vm1617, %v1689, %v1415
      %v1722 = vsel %vm1617, %v1690, %v1417
      %v1723 = vsel %vm1617, %v1691, %v1419
      %v1724 = vsel %vm1617, %v1692, %v1421
      %v1725 = vsel %vm1617, %v1693, %v1423
      %v1726 = vsel %vm1617, %v1694, %v1425
      %v1727 = vsel %vm1617, %v1695, %v1427
      %v1728 = vsel %vm1617, %v1696, %v1429
      %v1729 = vsel %vm1617, %v1697, %v1431
      %v1730 = vsel %vm1617, %v1698, %v1433
      %v1731 = vsel %vm1617, %v1699, %v1435
      %v1732 = vsel %vm1617, %v1700, %v1437
      %v1733 = vsel %vm1617, %v1701, %v1439
      %v1734 = vsel %vm1617, %v1702, %v1441
      %v1735 = vsel %vm1617, %v1703, %v1443
      %v1736 = vsel %vm1617, %v1704, %v1445
      %v1737 = vsel %vm1617, %v1705, %v1447
      %v1738 = vsel %vm1617, %v1706, %v1449
      %v1739 = vsel %vm1617, %v1707, %v1451
      %v1740 = vsel %vm1617, %v1708, %v1453
      %v1741 = vsel %vm1617, %v1709, %v1455
      %v1742 = vsel %vm1617, %v1710, %v1457
      %v1743 = vsel %vm1617, %v1711, %v1459
      %v1744 = vsel %vm1617, %v1712, %v1082
      %v1745 = vsel %vm1617, %v1713, %v1082
      %v1746 = vsel %vm1649, %v1714, %v1493
      %v1747 = vsel %vm1649, %v1715, %v1495
      %v1748 = vsel %vm1649, %v1716, %v1497
      %v1749 = vsel %vm1649, %v1717, %v1499
      %v1750 = vsel %vm1649, %v1718, %v1501
      %v1751 = vsel %vm1649, %v1719, %v1503
      %v1752 = vsel %vm1649, %v1720, %v1505
      %v1753 = vsel %vm1649, %v1721, %v1507
      %v1754 = vsel %vm1649, %v1722, %v1509
      %v1755 = vsel %vm1649, %v1723, %v1511
      %v1756 = vsel %vm1649, %v1724, %v1513
      %v1757 = vsel %vm1649, %v1725, %v1515
      %v1758 = vsel %vm1649, %v1726, %v1517
      %v1759 = vsel %vm1649, %v1727, %v1519
      %v1760 = vsel %vm1649, %v1728, %v1521
      %v1761 = vsel %vm1649, %v1729, %v1523
      %v1762 = vsel %vm1649, %v1730, %v1525
      %v1763 = vsel %vm1649, %v1731, %v1527
      %v1764 = vsel %vm1649, %v1732, %v1529
      %v1765 = vsel %vm1649, %v1733, %v1531
      %v1766 = vsel %vm1649, %v1734, %v1533
      %v1767 = vsel %vm1649, %v1735, %v1535
      %v1768 = vsel %vm1649, %v1736, %v1537
      %v1769 = vsel %vm1649, %v1737, %v1539
      %v1770 = vsel %vm1649, %v1738, %v1541
      %v1771 = vsel %vm1649, %v1739, %v1543
      %v1772 = vsel %vm1649, %v1740, %v1545
      %v1773 = vsel %vm1649, %v1741, %v1547
      %v1774 = vsel %vm1649, %v1742, %v1549
      %v1775 = vsel %vm1649, %v1743, %v1551
      %v1776 = vsel %vm1649, %v1744, %v1553
      %v1777 = vsel %vm1649, %v1745, %v1553
      %v1778 = vld [vmem:[%s5] sm:$0xff]
      %v1779 = vld [vmem:[%s5 + $0x8] sm:$0xff]
      %v1780 = vld [vmem:[%s5 + $0x10] sm:$0xff]
      %v1781 = vld [vmem:[%s5 + $0x18] sm:$0xff]
      %v1782 = vld [vmem:[%s5 + $0x20] sm:$0xff]
      %v1783 = vld [vmem:[%s5 + $0x28] sm:$0xff]
      %v1784 = vld [vmem:[%s5 + $0x30] sm:$0xff]
      %v1785 = vld [vmem:[%s5 + $0x38] sm:$0xff]
      %v1786 = vld [vmem:[%s5 + $0x40] sm:$0xff]
      %v1787 = vld [vmem:[%s5 + $0x48] sm:$0xff]
      %v1788 = vld [vmem:[%s5 + $0x50] sm:$0xff]
      %v1789 = vld [vmem:[%s5 + $0x58] sm:$0xff]
      %v1790 = vld [vmem:[%s5 + $0x60] sm:$0xff]
      %v1791 = vld [vmem:[%s5 + $0x68] sm:$0xff]
      %v1792 = vld [vmem:[%s5 + $0x70] sm:$0xff]
      %v1793 = vld [vmem:[%s5 + $0x78] sm:$0xff]
      %v1794 = vld [vmem:[%s5 + $0x80] sm:$0xff]
      %v1795 = vld [vmem:[%s5 + $0x88] sm:$0xff]
      %v1796 = vld [vmem:[%s5 + $0x90] sm:$0xff]
      %v1797 = vld [vmem:[%s5 + $0x98] sm:$0xff]
      %v1798 = vld [vmem:[%s5 + $0xa0] sm:$0xff]
      %v1799 = vld [vmem:[%s5 + $0xa8] sm:$0xff]
      %v1800 = vld [vmem:[%s5 + $0xb0] sm:$0xff]
      %v1801 = vld [vmem:[%s5 + $0xb8] sm:$0xff]
      %v1802 = vld [vmem:[%s5 + $0xc0] sm:$0xff]
      %v1803 = vld [vmem:[%s5 + $0xc8] sm:$0xff]
      %v1804 = vld [vmem:[%s5 + $0xd0] sm:$0xff]
      %v1805 = vld [vmem:[%s5 + $0xd8] sm:$0xff]
      %v1806 = vld [vmem:[%s5 + $0xe0] sm:$0xff]
      %v1807 = vld [vmem:[%s5 + $0xe8] sm:$0xff]
      %v1808 = vld [vmem:[%s5 + $0xf0] sm:$0xff]
      %v1809 = vld [vmem:[%s5 + $0xf8] sm:$0xff]
      %v1810 = vld [vmem:[%s5 + $0x100] sm:$0xff]
      %v1811 = vld [vmem:[%s5 + $0x108] sm:$0xff]
      %v1812 = vld [vmem:[%s5 + $0x110] sm:$0xff]
      %v1813 = vld [vmem:[%s5 + $0x118] sm:$0xff]
      %v1814 = vsel %vm1585, %v897, 0
      %v1816 = vsel %vm1585, %v898, 0
      %v1818 = vsel %vm1585, %v899, 0
      %v1820 = vsel %vm1585, %v900, 0
      %v1822 = vsel %vm1585, %v901, 0
      %v1824 = vsel %vm1585, %v902, 0
      %v1826 = vsel %vm1585, %v903, 0
      %v1828 = vsel %vm1585, %v904, 0
      %v1830 = vsel %vm1585, %v905, 0
      %v1832 = vsel %vm1585, %v906, 0
      %v1834 = vsel %vm1585, %v907, 0
      %v1836 = vsel %vm1585, %v908, 0
      %v1838 = vsel %vm1585, %v909, 0
      %v1840 = vsel %vm1585, %v910, 0
      %v1842 = vsel %vm1585, %v911, 0
      %v1844 = vsel %vm1585, %v912, 0
      %v1846 = vsel %vm1585, %v913, 0
      %v1848 = vsel %vm1585, %v914, 0
      %v1850 = vsel %vm1585, %v915, 0
      %v1852 = vsel %vm1585, %v916, 0
      %v1854 = vsel %vm1585, %v917, 0
      %v1856 = vsel %vm1585, %v918, 0
      %v1858 = vsel %vm1585, %v919, 0
      %v1860 = vsel %vm1585, %v920, 0
      %v1862 = vsel %vm1585, %v921, 0
      %v1864 = vsel %vm1585, %v922, 0
      %v1866 = vsel %vm1585, %v923, 0
      %v1868 = vsel %vm1585, %v924, 0
      %v1870 = vsel %vm1585, %v925, 0
      %v1872 = vsel %vm1585, %v926, 0
      %v1874 = vsel %vm1585, 0.0, 0
      %1876 = vmatpush.msra.mxu0 %v1793
      %1877 = vmatpush.msra.mxu0 %v1792
      %1878 = vmatpush.msra.mxu0 %v1791
      %1879 = vmatpush.msra.mxu0 %v1790
      %1880 = vmatpush.msra.mxu0 %v1789
      %1881 = vmatpush.msra.mxu0 %v1788
      %1882 = vmatpush.msra.mxu0 %v1787
      %1883 = vmatpush.msra.mxu0 %v1786
      %1884 = vmatpush.msra.mxu0 %v1785
      %1885 = vmatpush.msra.mxu0 %v1784
      %1886 = vmatpush.msra.mxu0 %v1783
      %1887 = vmatpush.msra.mxu0 %v1782
      %1888 = vmatpush.msra.mxu0 %v1781
      %1889 = vmatpush.msra.mxu0 %v1780
      %1890 = vmatpush.msra.mxu0 %v1779
      %1891 = vmatpush.msra.mxu0 %v1778
      %1892 = vmatmul.f32.gmra.mxu0 %v1650
      %v1893 = vpop.f32.mrf.mxu0
      %v1894 = vadd.f32 0.0, %v1893
      %1895 = vmatmul.f32.gmra.mxu0 %v1651
      %v1896 = vpop.f32.mrf.mxu0
      %v1897 = vadd.f32 0.0, %v1896
      %1898 = vmatmul.f32.gmra.mxu0 %v1652
      %v1899 = vpop.f32.mrf.mxu0
      %v1900 = vadd.f32 0.0, %v1899
      %1901 = vmatmul.f32.gmra.mxu0 %v1653
      %v1902 = vpop.f32.mrf.mxu0
      %v1903 = vadd.f32 0.0, %v1902
      %1904 = vmatmul.f32.gmra.mxu0 %v1654
      %v1905 = vpop.f32.mrf.mxu0
      %v1906 = vadd.f32 0.0, %v1905
      %1907 = vmatmul.f32.gmra.mxu0 %v1655
      %v1908 = vpop.f32.mrf.mxu0
      %v1909 = vadd.f32 0.0, %v1908
      %1910 = vmatmul.f32.gmra.mxu0 %v1656
      %v1911 = vpop.f32.mrf.mxu0
      %v1912 = vadd.f32 0.0, %v1911
      %1913 = vmatmul.f32.gmra.mxu0 %v1657
      %v1914 = vpop.f32.mrf.mxu0
      %v1915 = vadd.f32 0.0, %v1914
      %1916 = vmatmul.f32.gmra.mxu0 %v1658
      %v1917 = vpop.f32.mrf.mxu0
      %v1918 = vadd.f32 0.0, %v1917
      %1919 = vmatmul.f32.gmra.mxu0 %v1659
      %v1920 = vpop.f32.mrf.mxu0
      %v1921 = vadd.f32 0.0, %v1920
      %1922 = vmatmul.f32.gmra.mxu0 %v1660
      %v1923 = vpop.f32.mrf.mxu0
      %v1924 = vadd.f32 0.0, %v1923
      %1925 = vmatmul.f32.gmra.mxu0 %v1661
      %v1926 = vpop.f32.mrf.mxu0
      %v1927 = vadd.f32 0.0, %v1926
      %1928 = vmatmul.f32.gmra.mxu0 %v1662
      %v1929 = vpop.f32.mrf.mxu0
      %v1930 = vadd.f32 0.0, %v1929
      %1931 = vmatmul.f32.gmra.mxu0 %v1663
      %v1932 = vpop.f32.mrf.mxu0
      %v1933 = vadd.f32 0.0, %v1932
      %1934 = vmatmul.f32.gmra.mxu0 %v1664
      %v1935 = vpop.f32.mrf.mxu0
      %v1936 = vadd.f32 0.0, %v1935
      %1937 = vmatmul.f32.gmra.mxu0 %v1665
      %v1938 = vpop.f32.mrf.mxu0
      %v1939 = vadd.f32 0.0, %v1938
      %1940 = vmatmul.f32.gmra.mxu0 %v1666
      %v1941 = vpop.f32.mrf.mxu0
      %v1942 = vadd.f32 0.0, %v1941
      %1943 = vmatmul.f32.gmra.mxu0 %v1667
      %v1944 = vpop.f32.mrf.mxu0
      %v1945 = vadd.f32 0.0, %v1944
      %1946 = vmatmul.f32.gmra.mxu0 %v1668
      %v1947 = vpop.f32.mrf.mxu0
      %v1948 = vadd.f32 0.0, %v1947
      %1949 = vmatmul.f32.gmra.mxu0 %v1669
      %v1950 = vpop.f32.mrf.mxu0
      %v1951 = vadd.f32 0.0, %v1950
      %1952 = vmatmul.f32.gmra.mxu0 %v1670
      %v1953 = vpop.f32.mrf.mxu0
      %v1954 = vadd.f32 0.0, %v1953
      %1955 = vmatmul.f32.gmra.mxu0 %v1671
      %v1956 = vpop.f32.mrf.mxu0
      %v1957 = vadd.f32 0.0, %v1956
      %1958 = vmatmul.f32.gmra.mxu0 %v1672
      %v1959 = vpop.f32.mrf.mxu0
      %v1960 = vadd.f32 0.0, %v1959
      %1961 = vmatmul.f32.gmra.mxu0 %v1673
      %v1962 = vpop.f32.mrf.mxu0
      %v1963 = vadd.f32 0.0, %v1962
      %1964 = vmatmul.f32.gmra.mxu0 %v1674
      %v1965 = vpop.f32.mrf.mxu0
      %v1966 = vadd.f32 0.0, %v1965
      %1967 = vmatmul.f32.gmra.mxu0 %v1675
      %v1968 = vpop.f32.mrf.mxu0
      %v1969 = vadd.f32 0.0, %v1968
      %1970 = vmatmul.f32.gmra.mxu0 %v1676
      %v1971 = vpop.f32.mrf.mxu0
      %v1972 = vadd.f32 0.0, %v1971
      %1973 = vmatmul.f32.gmra.mxu0 %v1677
      %v1974 = vpop.f32.mrf.mxu0
      %v1975 = vadd.f32 0.0, %v1974
      %1976 = vmatmul.f32.gmra.mxu0 %v1678
      %v1977 = vpop.f32.mrf.mxu0
      %v1978 = vadd.f32 0.0, %v1977
      %1979 = vmatmul.f32.gmra.mxu0 %v1679
      %v1980 = vpop.f32.mrf.mxu0
      %v1981 = vadd.f32 0.0, %v1980
      %1982 = vmatmul.f32.gmra.mxu0 %v1680
      %v1983 = vpop.f32.mrf.mxu0
      %v1984 = vadd.f32 0.0, %v1983
      %1985 = vmatmul.f32.gmra.mxu0 %v1681
      %v1986 = vpop.f32.mrf.mxu0
      %v1987 = vadd.f32 0.0, %v1986
      %1988 = vdwg.mxu0
      %1989 = vmatpush.msra.mxu0 %v1809
      %1990 = vmatpush.msra.mxu0 %v1808
      %1991 = vmatpush.msra.mxu0 %v1807
      %1992 = vmatpush.msra.mxu0 %v1806
      %1993 = vmatpush.msra.mxu0 %v1805
      %1994 = vmatpush.msra.mxu0 %v1804
      %1995 = vmatpush.msra.mxu0 %v1803
      %1996 = vmatpush.msra.mxu0 %v1802
      %1997 = vmatpush.msra.mxu0 %v1801
      %1998 = vmatpush.msra.mxu0 %v1800
      %1999 = vmatpush.msra.mxu0 %v1799
      %2000 = vmatpush.msra.mxu0 %v1798
      %2001 = vmatpush.msra.mxu0 %v1797
      %2002 = vmatpush.msra.mxu0 %v1796
      %2003 = vmatpush.msra.mxu0 %v1795
      %2004 = vmatpush.msra.mxu0 %v1794
      %2005 = vmatmul.f32.gmra.mxu0 %v1746
      %v2006 = vpop.f32.mrf.mxu0
      %v2007 = vadd.f32 %v1894, %v2006
      %2008 = vmatmul.f32.gmra.mxu0 %v1747
      %v2009 = vpop.f32.mrf.mxu0
      %v2010 = vadd.f32 %v1897, %v2009
      %2011 = vmatmul.f32.gmra.mxu0 %v1748
      %v2012 = vpop.f32.mrf.mxu0
      %v2013 = vadd.f32 %v1900, %v2012
      %2014 = vmatmul.f32.gmra.mxu0 %v1749
      %v2015 = vpop.f32.mrf.mxu0
      %v2016 = vadd.f32 %v1903, %v2015
      %2017 = vmatmul.f32.gmra.mxu0 %v1750
      %v2018 = vpop.f32.mrf.mxu0
      %v2019 = vadd.f32 %v1906, %v2018
      %2020 = vmatmul.f32.gmra.mxu0 %v1751
      %v2021 = vpop.f32.mrf.mxu0
      %v2022 = vadd.f32 %v1909, %v2021
      %2023 = vmatmul.f32.gmra.mxu0 %v1752
      %v2024 = vpop.f32.mrf.mxu0
      %v2025 = vadd.f32 %v1912, %v2024
      %2026 = vmatmul.f32.gmra.mxu0 %v1753
      %v2027 = vpop.f32.mrf.mxu0
      %v2028 = vadd.f32 %v1915, %v2027
      %2029 = vmatmul.f32.gmra.mxu0 %v1754
      %v2030 = vpop.f32.mrf.mxu0
      %v2031 = vadd.f32 %v1918, %v2030
      %2032 = vmatmul.f32.gmra.mxu0 %v1755
      %v2033 = vpop.f32.mrf.mxu0
      %v2034 = vadd.f32 %v1921, %v2033
      %2035 = vmatmul.f32.gmra.mxu0 %v1756
      %v2036 = vpop.f32.mrf.mxu0
      %v2037 = vadd.f32 %v1924, %v2036
      %2038 = vmatmul.f32.gmra.mxu0 %v1757
      %v2039 = vpop.f32.mrf.mxu0
      %v2040 = vadd.f32 %v1927, %v2039
      %2041 = vmatmul.f32.gmra.mxu0 %v1758
      %v2042 = vpop.f32.mrf.mxu0
      %v2043 = vadd.f32 %v1930, %v2042
      %2044 = vmatmul.f32.gmra.mxu0 %v1759
      %v2045 = vpop.f32.mrf.mxu0
      %v2046 = vadd.f32 %v1933, %v2045
      %2047 = vmatmul.f32.gmra.mxu0 %v1760
      %v2048 = vpop.f32.mrf.mxu0
      %v2049 = vadd.f32 %v1936, %v2048
      %2050 = vmatmul.f32.gmra.mxu0 %v1761
      %v2051 = vpop.f32.mrf.mxu0
      %v2052 = vadd.f32 %v1939, %v2051
      %2053 = vmatmul.f32.gmra.mxu0 %v1762
      %v2054 = vpop.f32.mrf.mxu0
      %v2055 = vadd.f32 %v1942, %v2054
      %2056 = vmatmul.f32.gmra.mxu0 %v1763
      %v2057 = vpop.f32.mrf.mxu0
      %v2058 = vadd.f32 %v1945, %v2057
      %2059 = vmatmul.f32.gmra.mxu0 %v1764
      %v2060 = vpop.f32.mrf.mxu0
      %v2061 = vadd.f32 %v1948, %v2060
      %2062 = vmatmul.f32.gmra.mxu0 %v1765
      %v2063 = vpop.f32.mrf.mxu0
      %v2064 = vadd.f32 %v1951, %v2063
      %2065 = vmatmul.f32.gmra.mxu0 %v1766
      %v2066 = vpop.f32.mrf.mxu0
      %v2067 = vadd.f32 %v1954, %v2066
      %2068 = vmatmul.f32.gmra.mxu0 %v1767
      %v2069 = vpop.f32.mrf.mxu0
      %v2070 = vadd.f32 %v1957, %v2069
      %2071 = vmatmul.f32.gmra.mxu0 %v1768
      %v2072 = vpop.f32.mrf.mxu0
      %v2073 = vadd.f32 %v1960, %v2072
      %2074 = vmatmul.f32.gmra.mxu0 %v1769
      %v2075 = vpop.f32.mrf.mxu0
      %v2076 = vadd.f32 %v1963, %v2075
      %2077 = vmatmul.f32.gmra.mxu0 %v1770
      %v2078 = vpop.f32.mrf.mxu0
      %v2079 = vadd.f32 %v1966, %v2078
      %2080 = vmatmul.f32.gmra.mxu0 %v1771
      %v2081 = vpop.f32.mrf.mxu0
      %v2082 = vadd.f32 %v1969, %v2081
      %2083 = vmatmul.f32.gmra.mxu0 %v1772
      %v2084 = vpop.f32.mrf.mxu0
      %v2085 = vadd.f32 %v1972, %v2084
      %2086 = vmatmul.f32.gmra.mxu0 %v1773
      %v2087 = vpop.f32.mrf.mxu0
      %v2088 = vadd.f32 %v1975, %v2087
      %2089 = vmatmul.f32.gmra.mxu0 %v1774
      %v2090 = vpop.f32.mrf.mxu0
      %v2091 = vadd.f32 %v1978, %v2090
      %2092 = vmatmul.f32.gmra.mxu0 %v1775
      %v2093 = vpop.f32.mrf.mxu0
      %v2094 = vadd.f32 %v1981, %v2093
      %2095 = vmatmul.f32.gmra.mxu0 %v1776
      %v2096 = vpop.f32.mrf.mxu0
      %v2097 = vadd.f32 %v1984, %v2096
      %2098 = vmatmul.f32.gmra.mxu0 %v1777
      %v2099 = vpop.f32.mrf.mxu0
      %v2100 = vadd.f32 %v1987, %v2099
      %2101 = vdwg.mxu0
      %2102 = vmatpush.msra.mxu0 0.0
      %2103 = vmatpush.msra.mxu0 0.0
      %2104 = vmatpush.msra.mxu0 0.0
      %2105 = vmatpush.msra.mxu0 0.0
      %2106 = vmatpush.msra.mxu0 0.0
      %2107 = vmatpush.msra.mxu0 0.0
      %2108 = vmatpush.msra.mxu0 0.0
      %2109 = vmatpush.msra.mxu0 0.0
      %2110 = vmatpush.msra.mxu0 0.0
      %2111 = vmatpush.msra.mxu0 0.0
      %2112 = vmatpush.msra.mxu0 0.0
      %2113 = vmatpush.msra.mxu0 0.0
      %2114 = vmatpush.msra.mxu0 %v1813
      %2115 = vmatpush.msra.mxu0 %v1812
      %2116 = vmatpush.msra.mxu0 %v1811
      %2117 = vmatpush.msra.mxu0 %v1810
      %2118 = vmatmul.f32.gmra.mxu0 %v1814
      %v2119 = vpop.f32.mrf.mxu0
      %v2120 = vadd.f32 %v2007, %v2119
      %2121 = vmatmul.f32.gmra.mxu0 %v1816
      %v2122 = vpop.f32.mrf.mxu0
      %v2123 = vadd.f32 %v2010, %v2122
      %2124 = vmatmul.f32.gmra.mxu0 %v1818
      %v2125 = vpop.f32.mrf.mxu0
      %v2126 = vadd.f32 %v2013, %v2125
      %2127 = vmatmul.f32.gmra.mxu0 %v1820
      %v2128 = vpop.f32.mrf.mxu0
      %v2129 = vadd.f32 %v2016, %v2128
      %2130 = vmatmul.f32.gmra.mxu0 %v1822
      %v2131 = vpop.f32.mrf.mxu0
      %v2132 = vadd.f32 %v2019, %v2131
      %2133 = vmatmul.f32.gmra.mxu0 %v1824
      %v2134 = vpop.f32.mrf.mxu0
      %v2135 = vadd.f32 %v2022, %v2134
      %2136 = vmatmul.f32.gmra.mxu0 %v1826
      %v2137 = vpop.f32.mrf.mxu0
      %v2138 = vadd.f32 %v2025, %v2137
      %2139 = vmatmul.f32.gmra.mxu0 %v1828
      %v2140 = vpop.f32.mrf.mxu0
      %v2141 = vadd.f32 %v2028, %v2140
      %2142 = vmatmul.f32.gmra.mxu0 %v1830
      %v2143 = vpop.f32.mrf.mxu0
      %v2144 = vadd.f32 %v2031, %v2143
      %2145 = vmatmul.f32.gmra.mxu0 %v1832
      %v2146 = vpop.f32.mrf.mxu0
      %v2147 = vadd.f32 %v2034, %v2146
      %2148 = vmatmul.f32.gmra.mxu0 %v1834
      %v2149 = vpop.f32.mrf.mxu0
      %v2150 = vadd.f32 %v2037, %v2149
      %2151 = vmatmul.f32.gmra.mxu0 %v1836
      %v2152 = vpop.f32.mrf.mxu0
      %v2153 = vadd.f32 %v2040, %v2152
      %2154 = vmatmul.f32.gmra.mxu0 %v1838
      %v2155 = vpop.f32.mrf.mxu0
      %v2156 = vadd.f32 %v2043, %v2155
      %2157 = vmatmul.f32.gmra.mxu0 %v1840
      %v2158 = vpop.f32.mrf.mxu0
      %v2159 = vadd.f32 %v2046, %v2158
      %2160 = vmatmul.f32.gmra.mxu0 %v1842
      %v2161 = vpop.f32.mrf.mxu0
      %v2162 = vadd.f32 %v2049, %v2161
      %2163 = vmatmul.f32.gmra.mxu0 %v1844
      %v2164 = vpop.f32.mrf.mxu0
      %v2165 = vadd.f32 %v2052, %v2164
      %2166 = vmatmul.f32.gmra.mxu0 %v1846
      %v2167 = vpop.f32.mrf.mxu0
      %v2168 = vadd.f32 %v2055, %v2167
      %2169 = vmatmul.f32.gmra.mxu0 %v1848
      %v2170 = vpop.f32.mrf.mxu0
      %v2171 = vadd.f32 %v2058, %v2170
      %2172 = vmatmul.f32.gmra.mxu0 %v1850
      %v2173 = vpop.f32.mrf.mxu0
      %v2174 = vadd.f32 %v2061, %v2173
      %2175 = vmatmul.f32.gmra.mxu0 %v1852
      %v2176 = vpop.f32.mrf.mxu0
      %v2177 = vadd.f32 %v2064, %v2176
      %2178 = vmatmul.f32.gmra.mxu0 %v1854
      %v2179 = vpop.f32.mrf.mxu0
      %v2180 = vadd.f32 %v2067, %v2179
      %2181 = vmatmul.f32.gmra.mxu0 %v1856
      %v2182 = vpop.f32.mrf.mxu0
      %v2183 = vadd.f32 %v2070, %v2182
      %2184 = vmatmul.f32.gmra.mxu0 %v1858
      %v2185 = vpop.f32.mrf.mxu0
      %v2186 = vadd.f32 %v2073, %v2185
      %2187 = vmatmul.f32.gmra.mxu0 %v1860
      %v2188 = vpop.f32.mrf.mxu0
      %v2189 = vadd.f32 %v2076, %v2188
      %2190 = vmatmul.f32.gmra.mxu0 %v1862
      %v2191 = vpop.f32.mrf.mxu0
      %v2192 = vadd.f32 %v2079, %v2191
      %2193 = vmatmul.f32.gmra.mxu0 %v1864
      %v2194 = vpop.f32.mrf.mxu0
      %v2195 = vadd.f32 %v2082, %v2194
      %2196 = vmatmul.f32.gmra.mxu0 %v1866
      %v2197 = vpop.f32.mrf.mxu0
      %v2198 = vadd.f32 %v2085, %v2197
      %2199 = vmatmul.f32.gmra.mxu0 %v1868
      %v2200 = vpop.f32.mrf.mxu0
      %v2201 = vadd.f32 %v2088, %v2200
      %2202 = vmatmul.f32.gmra.mxu0 %v1870
      %v2203 = vpop.f32.mrf.mxu0
      %v2204 = vadd.f32 %v2091, %v2203
      %2205 = vmatmul.f32.gmra.mxu0 %v1872
      %v2206 = vpop.f32.mrf.mxu0
      %v2207 = vadd.f32 %v2094, %v2206
      %2208 = vmatmul.f32.gmra.mxu0 %v1874
      %v2209 = vpop.f32.mrf.mxu0
      %v2210 = vadd.f32 %v2097, %v2209
      %2211 = vmatmul.f32.gmra.mxu0 %v1874
      %v2212 = vpop.f32.mrf.mxu0
      %v2213 = vadd.f32 %v2100, %v2212
      %2214 = vdwg.mxu0
      %vm2215 = vcmask 64512
      %2216 = vst.msk [vmem:[%s278] sm:$0xff] %vm2215, %v2120
      %2217 = vst.msk [vmem:[%s278 + $0x8] sm:$0xff] %vm2215, %v2123
      %2218 = vst.msk [vmem:[%s278 + $0x10] sm:$0xff] %vm2215, %v2126
      %2219 = vst.msk [vmem:[%s278 + $0x18] sm:$0xff] %vm2215, %v2129
      %2220 = vst.msk [vmem:[%s278 + $0x20] sm:$0xff] %vm2215, %v2132
      %2221 = vst.msk [vmem:[%s278 + $0x28] sm:$0xff] %vm2215, %v2135
      %2222 = vst.msk [vmem:[%s278 + $0x30] sm:$0xff] %vm2215, %v2138
      %2223 = vst.msk [vmem:[%s278 + $0x38] sm:$0xff] %vm2215, %v2141
      %2224 = vst.msk [vmem:[%s278 + $0x40] sm:$0xff] %vm2215, %v2144
      %2225 = vst.msk [vmem:[%s278 + $0x48] sm:$0xff] %vm2215, %v2147
      %2226 = vst.msk [vmem:[%s278 + $0x50] sm:$0xff] %vm2215, %v2150
      %2227 = vst.msk [vmem:[%s278 + $0x58] sm:$0xff] %vm2215, %v2153
      %2228 = vst.msk [vmem:[%s278 + $0x60] sm:$0xff] %vm2215, %v2156
      %2229 = vst.msk [vmem:[%s278 + $0x68] sm:$0xff] %vm2215, %v2159
      %2230 = vst.msk [vmem:[%s278 + $0x70] sm:$0xff] %vm2215, %v2162
      %2231 = vst.msk [vmem:[%s278 + $0x78] sm:$0xff] %vm2215, %v2165
      %2232 = vst.msk [vmem:[%s278 + $0x80] sm:$0xff] %vm2215, %v2168
      %2233 = vst.msk [vmem:[%s278 + $0x88] sm:$0xff] %vm2215, %v2171
      %2234 = vst.msk [vmem:[%s278 + $0x90] sm:$0xff] %vm2215, %v2174
      %2235 = vst.msk [vmem:[%s278 + $0x98] sm:$0xff] %vm2215, %v2177
      %2236 = vst.msk [vmem:[%s278 + $0xa0] sm:$0xff] %vm2215, %v2180
      %2237 = vst.msk [vmem:[%s278 + $0xa8] sm:$0xff] %vm2215, %v2183
      %2238 = vst.msk [vmem:[%s278 + $0xb0] sm:$0xff] %vm2215, %v2186
      %2239 = vst.msk [vmem:[%s278 + $0xb8] sm:$0xff] %vm2215, %v2189
      %2240 = vst.msk [vmem:[%s278 + $0xc0] sm:$0xff] %vm2215, %v2192
      %2241 = vst.msk [vmem:[%s278 + $0xc8] sm:$0xff] %vm2215, %v2195
      %2242 = vst.msk [vmem:[%s278 + $0xd0] sm:$0xff] %vm2215, %v2198
      %2243 = vst.msk [vmem:[%s278 + $0xd8] sm:$0xff] %vm2215, %v2201
      %2244 = vst.msk [vmem:[%s278 + $0xe0] sm:$0xff] %vm2215, %v2204
      %2245 = vst.msk [vmem:[%s278 + $0xe8] sm:$0xff] %vm2215, %v2207
      %2246 = vst.msk [vmem:[%s278 + $0xf0] sm:$0xff] %vm2215, %v2210
      %2247 = vst.msk [vmem:[%s278 + $0xf8] sm:$0xff] %vm2215, %v2213
      %p2248 = scmp.lt.s32.totalorder %s18, 1
      %s2249 = scalar_select %p2248, %s18, 1
      %s2250 = smul.addr %s2249, 32
      %s2251 = smul.addr %s2250, 8
      %s2252 = scalar_lea.vmem %s7, %s2251
      // Predicated region
      $region49: #{tpu_custom_call.1} parent=47 // pred_check
        %p2253 = pneg %p188
      $region50: #{tpu_custom_call.1} parent=47 // pred_check_branch
        %2255 = sbr.rel (%p2253) target = $region52
      $region51: #{tpu_custom_call.1} parent=47 // pred_region
        _
      $region52: #{tpu_custom_call.1} parent=47 // pred_fallthru
        _
    $region48: #{tpu_custom_call.1} parent=5 // pred_fallthru
      _
    %p2256 = scmp.le.s32.totalorder 2, %s13
    // Predicated region
    $region53: #{tpu_custom_call.1} parent=5 // pred_check
      %p2257 = pneg %p2256
    $region54: #{tpu_custom_call.1} parent=5 // pred_check_branch
      %2259 = sbr.rel (%p2257) target = $region56
    $region55: #{tpu_custom_call.1} parent=5 // pred_region
      %s2260 = ssub.s32 %s13, 2
      // Predicated region
      $region57: #{tpu_custom_call.1} parent=55 // pred_check
        %p2261 = pneg %p194
      $region58: #{tpu_custom_call.1} parent=55 // pred_check_branch
        %2263 = sbr.rel (%p2261) target = $region60
      $region59: #{tpu_custom_call.1} parent=55 // pred_region
        %p2264 = scmp.lt.s32.totalorder %s19, 1
        %s2265 = scalar_select %p2264, %s19, 1
        %s2266 = smul.addr %s2265, 32
        %s2267 = smul.addr %s2266, 8
        %s2268 = scalar_lea.vmem %s7, %s2267
      $region60: #{tpu_custom_call.1} parent=55 // pred_fallthru
        _
    $region56: #{tpu_custom_call.1} parent=5 // pred_fallthru
      _
  $region6: #{tpu_custom_call.1} parent=0 // loop_footer
    %s17 = sadd.s32 1, %s13
  $region7: #{tpu_custom_call.1} parent=0 // loop_footer_branch
    %12 = sbr.rel target = $region3
  $region8: #{tpu_custom_call.1} parent=0 // loop_exit
    _

</llo_original>
